<compile_context>
chip_gen: v6e
topology: v6e:2x2x1
jax: 0.10.0
libtpu: 0.0.40
codegen_flags: <defaults>
</compile_context>

<pallas_src>
from functools import partial

import jax
import jax.numpy as jnp
import numpy as np
from jax import lax
from jax.experimental import pallas as pl
from jax.experimental.pallas import tpu as pltpu


def self_attention_kernel(
    x_ref,                  # (bm, S*D)   input tile (S squeezed into lanes)
    wproj_ref, bproj_ref,   # S==1: (D, H)/(1, H) = W_v only;  S>1: (D, 3H)/(1, 3H) fused QKV
    hi_ref,                 # (1, H)      head_importance expanded to lane width H
    wd_ref, bd_ref,         # (H, D), (1, D)   dense
    lnw_ref, lnb_ref,       # (1, D), (1, D)   LayerNorm
    wo_ref, bo_ref,         # out_dim==1: (1, S*D)/(1, 1);  else: (S*D, out_dim)/(1, out_dim)
    out_ref,                # (bm, out_dim)
    hid1_ref,               # (bm, S*D)
    *, seq_len, num_heads, head_size, eps, reduce_out,
):
    S = seq_len
    H = num_heads * head_size
    D = wd_ref.shape[1]

    xflat = x_ref[...]                              # (bm, S*D)
    bm = xflat.shape[0]
    x2 = xflat if S == 1 else xflat.reshape(bm * S, D)

    # --- projection: one MXU matmul (V only for S==1, fused QKV otherwise) ---
    proj = (jnp.dot(x2, wproj_ref[...], preferred_element_type=jnp.float32)
            + bproj_ref[...])

    # --- head-importance normalization (lane-wise, hoisted out of any head loop) ---
    hi = hi_ref[...]                                # (1, H); head h repeated head_size times
    # sum over lanes counts each head head_size times -> rescale by head_size.
    hi_norm = hi * (jnp.float32(head_size) / jnp.sum(hi))

    if S == 1:
        # softmax over a single key is identically 1 -> context == value.
        ctx = proj                                  # (bm, H)
    else:
        # Generic multi-head attention path (not exercised by the module's S==1 use).
        q = proj[:, :H].reshape(bm, S, num_heads, head_size)
        k = proj[:, H:2 * H].reshape(bm, S, num_heads, head_size)
        v = proj[:, 2 * H:].reshape(bm, S, num_heads, head_size)
        qh = jnp.swapaxes(q, 1, 2).reshape(bm * num_heads, S, head_size)
        kh = jnp.swapaxes(k, 1, 2).reshape(bm * num_heads, S, head_size)
        vh = jnp.swapaxes(v, 1, 2).reshape(bm * num_heads, S, head_size)
        scale = 1.0 / jnp.sqrt(jnp.float32(head_size))
        scores = jnp.einsum('bqd,bkd->bqk', qh, kh,
                            preferred_element_type=jnp.float32) * scale
        scores = scores - jnp.max(scores, axis=-1, keepdims=True)
        p = jnp.exp(scores)
        probs = p / jnp.sum(p, axis=-1, keepdims=True)   # exact softmax (1e-5 tolerance)
        # attn_dropout: identity (eval mode)
        ctx = jnp.einsum('bqk,bkd->bqd', probs, vh,
                         preferred_element_type=jnp.float32)
        ctx = jnp.swapaxes(ctx.reshape(bm, num_heads, S, head_size), 1, 2)
        ctx = ctx.reshape(bm * S, H)

    # --- head weighting: single lane-wise multiply ---
    ctx_w = ctx * hi_norm                           # (bm*S, H)

    # --- output projection (dense) ---
    hidden1 = (jnp.dot(ctx_w, wd_ref[...], preferred_element_type=jnp.float32)
               + bd_ref[...])                       # (bm*S, D)
    hid1_ref[...] = hidden1 if S == 1 else hidden1.reshape(bm, S * D)
    # out_dropout: identity (eval mode)

    # --- residual + LayerNorm (biased variance, eps inside sqrt) ---
    resid = hidden1 + x2
    u = jnp.mean(resid, axis=-1, keepdims=True)
    s = jnp.mean((resid - u) ** 2, axis=-1, keepdims=True)
    normed = (resid - u) * lax.rsqrt(s + eps)       # rsqrt -> EUP slot
    hidden = lnw_ref[...] * normed + lnb_ref[...]   # (bm*S, D)

    # --- flatten, ReLU, final linear ---
    flat = hidden if S == 1 else hidden.reshape(bm, S * D)
    act = jnp.maximum(flat, 0.0)
    if reduce_out:
        # out_dim == 1: lane reduction against the single weight row (no MXU pass,
        # 4 B/row written back instead of a 128-lane padded slab).
        out_ref[...] = (jnp.sum(act * wo_ref[...], axis=-1, keepdims=True)
                        + bo_ref[...])
    else:
        out_ref[...] = (jnp.dot(act, wo_ref[...], preferred_element_type=jnp.float32)
                        + bo_ref[...])


def _pick_block_b(B, S, D, out_dim=1):
    """Largest batch tile that divides B, is a multiple of 8, fits a conservative
    VMEM budget, and leaves >= 2 grid steps (so v7x's two TensorCores both get work)."""
    if B <= 8:
        return B
    # f32 bytes/row across the batch-tiled streams (x + hid1 + out), double-buffered.
    row_bytes = 4 * (2 * S * D + max(out_dim, 1)) * 2
    cap = min(4096, (12 << 20) // max(row_bytes, 1))   # headroom under v5e's 16 MiB scoped default
    cap = min(cap, B // 2)                             # >= 2 grid steps for v7x megacore
    cap = max(8, cap - cap % 8)
    bm = cap
    while bm > 8 and B % bm:
        bm -= 8
    if B % bm:
        bm = B                                         # B has no multiple-of-8 divisor <= cap
    return bm


def self_attention_forward(x, params, *, num_heads, eps=1e-12, block_b=None):
    B, S, D = x.shape
    H = params['wq'].shape[1]
    assert H % num_heads == 0, "hidden_size must be a multiple of num_attention_heads"
    head_size = H // num_heads
    out_dim = params['wo'].shape[1]
    assert params['wo'].shape[0] == S * D, \
        "final Linear requires wo.shape[0] == S*D (S==1 in the PyTorch module)"

    # ---- host-side layout plumbing (fusion / squeezing), not compute hoisting ----
    if S == 1:
        wproj, bproj = params['wv'], params['bv']            # V only: ctx == value
    else:
        wproj = jnp.concatenate([params['wq'], params['wk'], params['wv']], axis=1)
        bproj = jnp.concatenate([params['bq'], params['bk'], params['bv']], axis=1)
    hi_exp = jnp.repeat(params['hi'], head_size, axis=1)      # (1, H)

    reduce_out = (out_dim == 1)
    if reduce_out:
        wo_k = params['wo'].reshape(1, S * D)                 # single weight row
        bo_k = params['bo'].reshape(1, 1)
    else:
        wo_k, bo_k = params['wo'], params['bo']

    x2d = x.reshape(B, S * D)                                 # squeeze S at the spec level

    if block_b is None:
        block_b = _pick_block_b(B, S, D, out_dim)
    assert B % block_b == 0
    grid = (B // block_b,)

    kernel = partial(self_attention_kernel, seq_len=S, num_heads=num_heads,
                     head_size=head_size, eps=eps, reduce_out=reduce_out)

    weights = (wproj, bproj, hi_exp, params['wd'], params['bd'],
               params['lnw'], params['lnb'], wo_k, bo_k)

    out_specs = (
        pl.BlockSpec((block_b, out_dim), lambda i: (i, 0)),   # output (no lane padding)
        pl.BlockSpec((block_b, S * D), lambda i: (i, 0)),     # hidden_states1 (2-D, S squeezed)
    )
    out_shapes = (jax.ShapeDtypeStruct((B, out_dim), jnp.float32),
                  jax.ShapeDtypeStruct((B, S * D), jnp.float32))

    def build(single_buffer_weights):
        def wspec(a):
            # Whole array in VMEM, same block every grid step -> stays resident.
            if single_buffer_weights:
                return pl.BlockSpec(a.shape, lambda i: (0, 0),
                                    pipeline_mode=pl.Buffered(1))
            return pl.BlockSpec(a.shape, lambda i: (0, 0))
        in_specs = ([pl.BlockSpec((block_b, S * D), lambda i: (i, 0))]
                    + [wspec(a) for a in weights])
        return pl.pallas_call(
            kernel,
            grid=grid,
            in_specs=in_specs,
            out_specs=out_specs,
            out_shape=out_shapes,
            compiler_params=pltpu.CompilerParams(
                dimension_semantics=("parallel",),
                vmem_limit_bytes=32 * 1024 * 1024),
        )

    try:
        out, hid1 = build(True)(x2d, *weights)
    except Exception:
        # TODO(synk): single-buffered resident weights (pl.Buffered(1)) not supported by
        # this jax/Mosaic build; fall back to default double-buffered weight blocks.
        out, hid1 = build(False)(x2d, *weights)

    return out, hid1.reshape(B, S, D)


def _reference(x, p, num_heads, eps=1e-12):
    """Pure-JAX reference (mirrors the PyTorch forward) used for validation."""
    B, S, D = x.shape
    H = p['wq'].shape[1]
    hd = H // num_heads
    q = (x.reshape(B * S, D) @ p['wq'] + p['bq']).reshape(B, S, num_heads, hd).transpose(0, 2, 1, 3)
    k = (x.reshape(B * S, D) @ p['wk'] + p['bk']).reshape(B, S, num_heads, hd).transpose(0, 2, 1, 3)
    v = (x.reshape(B * S, D) @ p['wv'] + p['bv']).reshape(B, S, num_heads, hd).transpose(0, 2, 1, 3)
    scores = jnp.einsum('bhqd,bhkd->bhqk', q, k) / np.sqrt(hd)
    probs = jax.nn.softmax(scores, axis=-1)
    ctx = jnp.einsum('bhqk,bhkd->bhqd', probs, v)
    hin = p['hi'][0] / jnp.sum(p['hi'][0])
    ctx = ctx * hin[None, :, None, None]
    ctx = ctx.transpose(0, 2, 1, 3).reshape(B, S, H)
    hidden1 = ctx.reshape(B * S, H) @ p['wd'] + p['bd']
    hidden1 = hidden1.reshape(B, S, D)
    r = hidden1 + x
    u = r.mean(-1, keepdims=True)
    s = ((r - u) ** 2).mean(-1, keepdims=True)
    hidden = p['lnw'] * ((r - u) / jnp.sqrt(s + eps)) + p['lnb']
    out = jnp.maximum(hidden.reshape(B, S * D), 0.0) @ p['wo'] + p['bo']
    return out, hidden1


if __name__ == "__main__":
    # Shapes implied by the module: input (B, input_size) -> view (B, 1, input_size).
    B, S = 16, 1
    input_size = 32          # D
    hidden_size = 32         # H (all_head_size)
    num_heads = 4
    out_dim = 1

    key = jax.random.PRNGKey(0)
    ks = jax.random.split(key, 10)

    x = jax.random.normal(ks[0], (B, S, input_size), jnp.float32)

    params = dict(
        wq=0.05 * jax.random.normal(ks[1], (input_size, hidden_size), jnp.float32),
        bq=0.01 * jax.random.normal(ks[2], (1, hidden_size), jnp.float32),
        wk=0.05 * jax.random.normal(ks[3], (input_size, hidden_size), jnp.float32),
        bk=0.01 * jax.random.normal(ks[4], (1, hidden_size), jnp.float32),
        wv=0.05 * jax.random.normal(ks[5], (input_size, hidden_size), jnp.float32),
        bv=0.01 * jax.random.normal(ks[6], (1, hidden_size), jnp.float32),
        hi=jnp.ones((1, num_heads), jnp.float32) + 0.1 * jnp.arange(num_heads, dtype=jnp.float32)[None, :],
        wd=0.05 * jax.random.normal(ks[7], (hidden_size, input_size), jnp.float32),
        bd=0.01 * jax.random.normal(ks[8], (1, input_size), jnp.float32),
        lnw=jnp.ones((1, input_size), jnp.float32),                     # LayerNorm weight
        lnb=jnp.zeros((1, input_size), jnp.float32),                    # LayerNorm bias
        wo=0.05 * jax.random.normal(ks[9], (input_size, out_dim), jnp.float32),
        bo=jnp.zeros((1, out_dim), jnp.float32),
    )

    # block_b auto-picked: for B=16 -> 8 rows/step, 2 grid steps (exercises megacore split).
    out, hidden1 = self_attention_forward(x, params, num_heads=num_heads)
    out, hidden1 = jax.block_until_ready((out, hidden1))

    ref_out, ref_hidden1 = _reference(x, params, num_heads)
    assert out.shape == ref_out.shape and hidden1.shape == ref_hidden1.shape
    assert jnp.allclose(out, ref_out, atol=1e-5, rtol=1e-5), "output mismatch"
    assert jnp.allclose(hidden1, ref_hidden1, atol=1e-5, rtol=1e-5), "hidden_states1 mismatch"

    print("KERNEL_OK")
</pallas_src>

<mosaic_0001>
module attributes {stable_mosaic.version = 11 : i64} {
  func.func @self_attention_kernel(%arg0: i32, %arg1: memref<8x32xf32, #tpu.memory_space<vmem>>, %arg2: memref<32x32xf32, #tpu.memory_space<vmem>>, %arg3: memref<1x32xf32, #tpu.memory_space<vmem>>, %arg4: memref<1x32xf32, #tpu.memory_space<vmem>>, %arg5: memref<32x32xf32, #tpu.memory_space<vmem>>, %arg6: memref<1x32xf32, #tpu.memory_space<vmem>>, %arg7: memref<1x32xf32, #tpu.memory_space<vmem>>, %arg8: memref<1x32xf32, #tpu.memory_space<vmem>>, %arg9: memref<1x32xf32, #tpu.memory_space<vmem>>, %arg10: memref<1x1xf32, #tpu.memory_space<vmem>>, %arg11: memref<8x1xf32, #tpu.memory_space<vmem>>, %arg12: memref<8x32xf32, #tpu.memory_space<vmem>>) attributes {dimension_semantics = [#tpu.dimension_semantics<parallel>], iteration_bounds = array<i64: 2>, scalar_prefetch = 0 : i64, scratch_operands = 0 : i64, tpu.core_type = #tpu.core_type<tc>, window_params = [{transform_indices = @transform_0, window_bounds = array<i64: 8, 32>}, {pipeline_mode = #tpu.pipeline_mode<synchronous>, transform_indices = @transform_1, window_bounds = array<i64: 32, 32>}, {pipeline_mode = #tpu.pipeline_mode<synchronous>, transform_indices = @transform_2, window_bounds = array<i64: 1, 32>}, {pipeline_mode = #tpu.pipeline_mode<synchronous>, transform_indices = @transform_3, window_bounds = array<i64: 1, 32>}, {pipeline_mode = #tpu.pipeline_mode<synchronous>, transform_indices = @transform_4, window_bounds = array<i64: 32, 32>}, {pipeline_mode = #tpu.pipeline_mode<synchronous>, transform_indices = @transform_5, window_bounds = array<i64: 1, 32>}, {pipeline_mode = #tpu.pipeline_mode<synchronous>, transform_indices = @transform_6, window_bounds = array<i64: 1, 32>}, {pipeline_mode = #tpu.pipeline_mode<synchronous>, transform_indices = @transform_7, window_bounds = array<i64: 1, 32>}, {pipeline_mode = #tpu.pipeline_mode<synchronous>, transform_indices = @transform_8, window_bounds = array<i64: 1, 32>}, {pipeline_mode = #tpu.pipeline_mode<synchronous>, transform_indices = @transform_9, window_bounds = array<i64: 1, 1>}, {transform_indices = @transform_10, window_bounds = array<i64: 8, 1>}, {transform_indices = @transform_11, window_bounds = array<i64: 8, 32>}]} {
    %c0 = arith.constant 0 : index
    %c0_0 = arith.constant 0 : index
    %0 = vector.load %arg1[%c0, %c0_0] : memref<8x32xf32, #tpu.memory_space<vmem>>, vector<8x32xf32>
    %c0_1 = arith.constant 0 : index
    %c0_2 = arith.constant 0 : index
    %1 = vector.load %arg2[%c0_1, %c0_2] : memref<32x32xf32, #tpu.memory_space<vmem>>, vector<32x32xf32>
    %cst = arith.constant dense<0.000000e+00> : vector<8x32xf32>
    %2 = tpu.matmul %0, %1, %cst {dimension_numbers = #tpu.dot_dimension_numbers<[1], [0], [0], [1], [0, 0, 1, 1], [], []>} : vector<8x32xf32>, vector<32x32xf32>, vector<8x32xf32> -> vector<8x32xf32>
    %c0_3 = arith.constant 0 : index
    %c0_4 = arith.constant 0 : index
    %3 = vector.load %arg3[%c0_3, %c0_4] : memref<1x32xf32, #tpu.memory_space<vmem>>, vector<1x32xf32>
    %4 = vector.broadcast %3 : vector<1x32xf32> to vector<8x32xf32>
    %5 = arith.addf %2, %4 : vector<8x32xf32>
    %c0_5 = arith.constant 0 : index
    %c0_6 = arith.constant 0 : index
    %6 = vector.load %arg4[%c0_5, %c0_6] : memref<1x32xf32, #tpu.memory_space<vmem>>, vector<1x32xf32>
    %7 = vector.shape_cast %6 : vector<1x32xf32> to vector<1x1x32xf32>
    %cst_7 = arith.constant dense<0.000000e+00> : vector<1xf32>
    %8 = vector.multi_reduction <add>, %7, %cst_7 [1, 2] : vector<1x1x32xf32> to vector<1xf32>
    %9 = vector.shape_cast %8 : vector<1xf32> to vector<1x1x1xf32>
    %10 = vector.extract %9[0, 0, 0] : f32 from vector<1x1x1xf32>
    %cst_8 = arith.constant 8.000000e+00 : f32
    %11 = arith.divf %cst_8, %10 : f32
    %12 = vector.broadcast %11 : f32 to vector<1x32xf32>
    %13 = arith.mulf %6, %12 : vector<1x32xf32>
    %14 = vector.broadcast %13 : vector<1x32xf32> to vector<8x32xf32>
    %15 = arith.mulf %5, %14 : vector<8x32xf32>
    %c0_9 = arith.constant 0 : index
    %c0_10 = arith.constant 0 : index
    %16 = vector.load %arg5[%c0_9, %c0_10] : memref<32x32xf32, #tpu.memory_space<vmem>>, vector<32x32xf32>
    %cst_11 = arith.constant dense<0.000000e+00> : vector<8x32xf32>
    %17 = tpu.matmul %15, %16, %cst_11 {dimension_numbers = #tpu.dot_dimension_numbers<[1], [0], [0], [1], [0, 0, 1, 1], [], []>} : vector<8x32xf32>, vector<32x32xf32>, vector<8x32xf32> -> vector<8x32xf32>
    %c0_12 = arith.constant 0 : index
    %c0_13 = arith.constant 0 : index
    %18 = vector.load %arg6[%c0_12, %c0_13] : memref<1x32xf32, #tpu.memory_space<vmem>>, vector<1x32xf32>
    %19 = vector.broadcast %18 : vector<1x32xf32> to vector<8x32xf32>
    %20 = arith.addf %17, %19 : vector<8x32xf32>
    %c0_14 = arith.constant 0 : index
    %c0_15 = arith.constant 0 : index
    %21 = vector.load %arg12[%c0_14, %c0_15] : memref<8x32xf32, #tpu.memory_space<vmem>>, vector<8x32xf32>
    tpu.vector_store %arg12[%c0_14, %c0_15], %20 {strides = array<i32>} : memref<8x32xf32, #tpu.memory_space<vmem>>, vector<8x32xf32>,
    %22 = arith.addf %20, %0 : vector<8x32xf32>
    %cst_16 = arith.constant dense<0.000000e+00> : vector<8xf32>
    %23 = vector.multi_reduction <add>, %22, %cst_16 [1] : vector<8x32xf32> to vector<8xf32>
    %24 = vector.shape_cast %23 : vector<8xf32> to vector<8x1xf32>
    %cst_17 = arith.constant 3.200000e+01 : f32
    %25 = vector.broadcast %cst_17 : f32 to vector<8x1xf32>
    %26 = arith.divf %24, %25 : vector<8x1xf32>
    %27 = vector.broadcast %26 : vector<8x1xf32> to vector<8x32xf32>
    %28 = arith.subf %22, %27 : vector<8x32xf32>
    %29 = arith.mulf %28, %28 : vector<8x32xf32>
    %cst_18 = arith.constant dense<0.000000e+00> : vector<8xf32>
    %30 = vector.multi_reduction <add>, %29, %cst_18 [1] : vector<8x32xf32> to vector<8xf32>
    %31 = vector.shape_cast %30 : vector<8xf32> to vector<8x1xf32>
    %cst_19 = arith.constant 3.200000e+01 : f32
    %32 = vector.broadcast %cst_19 : f32 to vector<8x1xf32>
    %33 = arith.divf %31, %32 : vector<8x1xf32>
    %34 = vector.broadcast %26 : vector<8x1xf32> to vector<8x32xf32>
    %35 = arith.subf %22, %34 : vector<8x32xf32>
    %cst_20 = arith.constant 9.99999996E-13 : f32
    %36 = vector.broadcast %cst_20 : f32 to vector<8x1xf32>
    %37 = arith.addf %33, %36 : vector<8x1xf32>
    %38 = math.rsqrt %37 : vector<8x1xf32>
    %39 = vector.broadcast %38 : vector<8x1xf32> to vector<8x32xf32>
    %40 = arith.mulf %35, %39 : vector<8x32xf32>
    %c0_21 = arith.constant 0 : index
    %c0_22 = arith.constant 0 : index
    %41 = vector.load %arg7[%c0_21, %c0_22] : memref<1x32xf32, #tpu.memory_space<vmem>>, vector<1x32xf32>
    %42 = vector.broadcast %41 : vector<1x32xf32> to vector<8x32xf32>
    %43 = arith.mulf %42, %40 : vector<8x32xf32>
    %c0_23 = arith.constant 0 : index
    %c0_24 = arith.constant 0 : index
    %44 = vector.load %arg8[%c0_23, %c0_24] : memref<1x32xf32, #tpu.memory_space<vmem>>, vector<1x32xf32>
    %45 = vector.broadcast %44 : vector<1x32xf32> to vector<8x32xf32>
    %46 = arith.addf %43, %45 : vector<8x32xf32>
    %cst_25 = arith.constant 0.000000e+00 : f32
    %47 = vector.broadcast %cst_25 : f32 to vector<8x32xf32>
    %48 = arith.maximumf %46, %47 : vector<8x32xf32>
    %c0_26 = arith.constant 0 : index
    %c0_27 = arith.constant 0 : index
    %49 = vector.load %arg9[%c0_26, %c0_27] : memref<1x32xf32, #tpu.memory_space<vmem>>, vector<1x32xf32>
    %50 = vector.broadcast %49 : vector<1x32xf32> to vector<8x32xf32>
    %51 = arith.mulf %48, %50 : vector<8x32xf32>
    %cst_28 = arith.constant dense<0.000000e+00> : vector<8xf32>
    %52 = vector.multi_reduction <add>, %51, %cst_28 [1] : vector<8x32xf32> to vector<8xf32>
    %53 = vector.shape_cast %52 : vector<8xf32> to vector<8x1xf32>
    %c0_29 = arith.constant 0 : index
    %c0_30 = arith.constant 0 : index
    %54 = vector.load %arg10[%c0_29, %c0_30] : memref<1x1xf32, #tpu.memory_space<vmem>>, vector<1x1xf32>
    %55 = vector.broadcast %54 : vector<1x1xf32> to vector<8x1xf32>
    %56 = arith.addf %53, %55 : vector<8x1xf32>
    %c0_31 = arith.constant 0 : index
    %c0_32 = arith.constant 0 : index
    %57 = vector.load %arg11[%c0_31, %c0_32] : memref<8x1xf32, #tpu.memory_space<vmem>>, vector<8x1xf32>
    tpu.vector_store %arg11[%c0_31, %c0_32], %56 {strides = array<i32>} : memref<8x1xf32, #tpu.memory_space<vmem>>, vector<8x1xf32>,
    return
  }
  func.func @transform_0(%arg0: i32) -> (i32, i32) {
    %c0_i32 = arith.constant 0 : i32
    %c0_i32_0 = arith.constant 0 : i32
    return %arg0, %c0_i32 : i32, i32
  }
  func.func @transform_1(%arg0: i32) -> (i32, i32) {
    %c0_i32 = arith.constant 0 : i32
    %c0_i32_0 = arith.constant 0 : i32
    %c0_i32_1 = arith.constant 0 : i32
    return %c0_i32, %c0_i32_0 : i32, i32
  }
  func.func @transform_2(%arg0: i32) -> (i32, i32) {
    %c0_i32 = arith.constant 0 : i32
    %c0_i32_0 = arith.constant 0 : i32
    %c0_i32_1 = arith.constant 0 : i32
    return %c0_i32, %c0_i32_0 : i32, i32
  }
  func.func @transform_3(%arg0: i32) -> (i32, i32) {
    %c0_i32 = arith.constant 0 : i32
    %c0_i32_0 = arith.constant 0 : i32
    %c0_i32_1 = arith.constant 0 : i32
    return %c0_i32, %c0_i32_0 : i32, i32
  }
  func.func @transform_4(%arg0: i32) -> (i32, i32) {
    %c0_i32 = arith.constant 0 : i32
    %c0_i32_0 = arith.constant 0 : i32
    %c0_i32_1 = arith.constant 0 : i32
    return %c0_i32, %c0_i32_0 : i32, i32
  }
  func.func @transform_5(%arg0: i32) -> (i32, i32) {
    %c0_i32 = arith.constant 0 : i32
    %c0_i32_0 = arith.constant 0 : i32
    %c0_i32_1 = arith.constant 0 : i32
    return %c0_i32, %c0_i32_0 : i32, i32
  }
  func.func @transform_6(%arg0: i32) -> (i32, i32) {
    %c0_i32 = arith.constant 0 : i32
    %c0_i32_0 = arith.constant 0 : i32
    %c0_i32_1 = arith.constant 0 : i32
    return %c0_i32, %c0_i32_0 : i32, i32
  }
  func.func @transform_7(%arg0: i32) -> (i32, i32) {
    %c0_i32 = arith.constant 0 : i32
    %c0_i32_0 = arith.constant 0 : i32
    %c0_i32_1 = arith.constant 0 : i32
    return %c0_i32, %c0_i32_0 : i32, i32
  }
  func.func @transform_8(%arg0: i32) -> (i32, i32) {
    %c0_i32 = arith.constant 0 : i32
    %c0_i32_0 = arith.constant 0 : i32
    %c0_i32_1 = arith.constant 0 : i32
    return %c0_i32, %c0_i32_0 : i32, i32
  }
  func.func @transform_9(%arg0: i32) -> (i32, i32) {
    %c0_i32 = arith.constant 0 : i32
    %c0_i32_0 = arith.constant 0 : i32
    %c0_i32_1 = arith.constant 0 : i32
    return %c0_i32, %c0_i32_0 : i32, i32
  }
  func.func @transform_10(%arg0: i32) -> (i32, i32) {
    %c0_i32 = arith.constant 0 : i32
    %c0_i32_0 = arith.constant 0 : i32
    return %arg0, %c0_i32 : i32, i32
  }
  func.func @transform_11(%arg0: i32) -> (i32, i32) {
    %c0_i32 = arith.constant 0 : i32
    %c0_i32_0 = arith.constant 0 : i32
    return %arg0, %c0_i32 : i32, i32
  }
}

module attributes {stable_mosaic.version = 11 : i64} {
  func.func @self_attention_kernel(%arg0: i32, %arg1: memref<8x32xf32, #tpu.memory_space<vmem>>, %arg2: memref<32x32xf32, #tpu.memory_space<vmem>>, %arg3: memref<1x32xf32, #tpu.memory_space<vmem>>, %arg4: memref<1x32xf32, #tpu.memory_space<vmem>>, %arg5: memref<32x32xf32, #tpu.memory_space<vmem>>, %arg6: memref<1x32xf32, #tpu.memory_space<vmem>>, %arg7: memref<1x32xf32, #tpu.memory_space<vmem>>, %arg8: memref<1x32xf32, #tpu.memory_space<vmem>>, %arg9: memref<1x32xf32, #tpu.memory_space<vmem>>, %arg10: memref<1x1xf32, #tpu.memory_space<vmem>>, %arg11: memref<8x1xf32, #tpu.memory_space<vmem>>, %arg12: memref<8x32xf32, #tpu.memory_space<vmem>>) attributes {dimension_semantics = [#tpu.dimension_semantics<parallel>], iteration_bounds = array<i64: 2>, scalar_prefetch = 0 : i64, scratch_operands = 0 : i64, tpu.core_type = #tpu.core_type<tc>, window_params = [{transform_indices = @transform_0, window_bounds = array<i64: 8, 32>}, {pipeline_mode = #tpu.pipeline_mode<synchronous>, transform_indices = @transform_1, window_bounds = array<i64: 32, 32>}, {pipeline_mode = #tpu.pipeline_mode<synchronous>, transform_indices = @transform_2, window_bounds = array<i64: 1, 32>}, {pipeline_mode = #tpu.pipeline_mode<synchronous>, transform_indices = @transform_3, window_bounds = array<i64: 1, 32>}, {pipeline_mode = #tpu.pipeline_mode<synchronous>, transform_indices = @transform_4, window_bounds = array<i64: 32, 32>}, {pipeline_mode = #tpu.pipeline_mode<synchronous>, transform_indices = @transform_5, window_bounds = array<i64: 1, 32>}, {pipeline_mode = #tpu.pipeline_mode<synchronous>, transform_indices = @transform_6, window_bounds = array<i64: 1, 32>}, {pipeline_mode = #tpu.pipeline_mode<synchronous>, transform_indices = @transform_7, window_bounds = array<i64: 1, 32>}, {pipeline_mode = #tpu.pipeline_mode<synchronous>, transform_indices = @transform_8, window_bounds = array<i64: 1, 32>}, {pipeline_mode = #tpu.pipeline_mode<synchronous>, transform_indices = @transform_9, window_bounds = array<i64: 1, 1>}, {transform_indices = @transform_10, window_bounds = array<i64: 8, 1>}, {transform_indices = @transform_11, window_bounds = array<i64: 8, 32>}]} {
    %c0 = arith.constant 0 : index
    %c0_0 = arith.constant 0 : index
    %0 = vector.load %arg1[%c0, %c0_0] : memref<8x32xf32, #tpu.memory_space<vmem>>, vector<8x32xf32>
    %c0_1 = arith.constant 0 : index
    %c0_2 = arith.constant 0 : index
    %1 = vector.load %arg2[%c0_1, %c0_2] : memref<32x32xf32, #tpu.memory_space<vmem>>, vector<32x32xf32>
    %cst = arith.constant dense<0.000000e+00> : vector<8x32xf32>
    %2 = tpu.matmul %0, %1, %cst {dimension_numbers = #tpu.dot_dimension_numbers<[1], [0], [0], [1], [0, 0, 1, 1], [], []>} : vector<8x32xf32>, vector<32x32xf32>, vector<8x32xf32> -> vector<8x32xf32>
    %c0_3 = arith.constant 0 : index
    %c0_4 = arith.constant 0 : index
    %3 = vector.load %arg3[%c0_3, %c0_4] : memref<1x32xf32, #tpu.memory_space<vmem>>, vector<1x32xf32>
    %4 = vector.broadcast %3 : vector<1x32xf32> to vector<8x32xf32>
    %5 = arith.addf %2, %4 : vector<8x32xf32>
    %c0_5 = arith.constant 0 : index
    %c0_6 = arith.constant 0 : index
    %6 = vector.load %arg4[%c0_5, %c0_6] : memref<1x32xf32, #tpu.memory_space<vmem>>, vector<1x32xf32>
    %7 = vector.shape_cast %6 : vector<1x32xf32> to vector<1x1x32xf32>
    %cst_7 = arith.constant dense<0.000000e+00> : vector<1xf32>
    %8 = vector.multi_reduction <add>, %7, %cst_7 [1, 2] : vector<1x1x32xf32> to vector<1xf32>
    %9 = vector.shape_cast %8 : vector<1xf32> to vector<1x1x1xf32>
    %10 = vector.extract %9[0, 0, 0] : f32 from vector<1x1x1xf32>
    %cst_8 = arith.constant 8.000000e+00 : f32
    %11 = arith.divf %cst_8, %10 : f32
    %12 = vector.broadcast %11 : f32 to vector<1x32xf32>
    %13 = arith.mulf %6, %12 : vector<1x32xf32>
    %14 = vector.broadcast %13 : vector<1x32xf32> to vector<8x32xf32>
    %15 = arith.mulf %5, %14 : vector<8x32xf32>
    %c0_9 = arith.constant 0 : index
    %c0_10 = arith.constant 0 : index
    %16 = vector.load %arg5[%c0_9, %c0_10] : memref<32x32xf32, #tpu.memory_space<vmem>>, vector<32x32xf32>
    %cst_11 = arith.constant dense<0.000000e+00> : vector<8x32xf32>
    %17 = tpu.matmul %15, %16, %cst_11 {dimension_numbers = #tpu.dot_dimension_numbers<[1], [0], [0], [1], [0, 0, 1, 1], [], []>} : vector<8x32xf32>, vector<32x32xf32>, vector<8x32xf32> -> vector<8x32xf32>
    %c0_12 = arith.constant 0 : index
    %c0_13 = arith.constant 0 : index
    %18 = vector.load %arg6[%c0_12, %c0_13] : memref<1x32xf32, #tpu.memory_space<vmem>>, vector<1x32xf32>
    %19 = vector.broadcast %18 : vector<1x32xf32> to vector<8x32xf32>
    %20 = arith.addf %17, %19 : vector<8x32xf32>
    %c0_14 = arith.constant 0 : index
    %c0_15 = arith.constant 0 : index
    %21 = vector.load %arg12[%c0_14, %c0_15] : memref<8x32xf32, #tpu.memory_space<vmem>>, vector<8x32xf32>
    tpu.vector_store %arg12[%c0_14, %c0_15], %20 {strides = array<i32>} : memref<8x32xf32, #tpu.memory_space<vmem>>, vector<8x32xf32>,
    %22 = arith.addf %20, %0 : vector<8x32xf32>
    %cst_16 = arith.constant dense<0.000000e+00> : vector<8xf32>
    %23 = vector.multi_reduction <add>, %22, %cst_16 [1] : vector<8x32xf32> to vector<8xf32>
    %24 = vector.shape_cast %23 : vector<8xf32> to vector<8x1xf32>
    %cst_17 = arith.constant 3.200000e+01 : f32
    %25 = vector.broadcast %cst_17 : f32 to vector<8x1xf32>
    %26 = arith.divf %24, %25 : vector<8x1xf32>
    %27 = vector.broadcast %26 : vector<8x1xf32> to vector<8x32xf32>
    %28 = arith.subf %22, %27 : vector<8x32xf32>
    %29 = arith.mulf %28, %28 : vector<8x32xf32>
    %cst_18 = arith.constant dense<0.000000e+00> : vector<8xf32>
    %30 = vector.multi_reduction <add>, %29, %cst_18 [1] : vector<8x32xf32> to vector<8xf32>
    %31 = vector.shape_cast %30 : vector<8xf32> to vector<8x1xf32>
    %cst_19 = arith.constant 3.200000e+01 : f32
    %32 = vector.broadcast %cst_19 : f32 to vector<8x1xf32>
    %33 = arith.divf %31, %32 : vector<8x1xf32>
    %34 = vector.broadcast %26 : vector<8x1xf32> to vector<8x32xf32>
    %35 = arith.subf %22, %34 : vector<8x32xf32>
    %cst_20 = arith.constant 9.99999996E-13 : f32
    %36 = vector.broadcast %cst_20 : f32 to vector<8x1xf32>
    %37 = arith.addf %33, %36 : vector<8x1xf32>
    %38 = math.rsqrt %37 : vector<8x1xf32>
    %39 = vector.broadcast %38 : vector<8x1xf32> to vector<8x32xf32>
    %40 = arith.mulf %35, %39 : vector<8x32xf32>
    %c0_21 = arith.constant 0 : index
    %c0_22 = arith.constant 0 : index
    %41 = vector.load %arg7[%c0_21, %c0_22] : memref<1x32xf32, #tpu.memory_space<vmem>>, vector<1x32xf32>
    %42 = vector.broadcast %41 : vector<1x32xf32> to vector<8x32xf32>
    %43 = arith.mulf %42, %40 : vector<8x32xf32>
    %c0_23 = arith.constant 0 : index
    %c0_24 = arith.constant 0 : index
    %44 = vector.load %arg8[%c0_23, %c0_24] : memref<1x32xf32, #tpu.memory_space<vmem>>, vector<1x32xf32>
    %45 = vector.broadcast %44 : vector<1x32xf32> to vector<8x32xf32>
    %46 = arith.addf %43, %45 : vector<8x32xf32>
    %cst_25 = arith.constant 0.000000e+00 : f32
    %47 = vector.broadcast %cst_25 : f32 to vector<8x32xf32>
    %48 = arith.maximumf %46, %47 : vector<8x32xf32>
    %c0_26 = arith.constant 0 : index
    %c0_27 = arith.constant 0 : index
    %49 = vector.load %arg9[%c0_26, %c0_27] : memref<1x32xf32, #tpu.memory_space<vmem>>, vector<1x32xf32>
    %50 = vector.broadcast %49 : vector<1x32xf32> to vector<8x32xf32>
    %51 = arith.mulf %48, %50 : vector<8x32xf32>
    %cst_28 = arith.constant dense<0.000000e+00> : vector<8xf32>
    %52 = vector.multi_reduction <add>, %51, %cst_28 [1] : vector<8x32xf32> to vector<8xf32>
    %53 = vector.shape_cast %52 : vector<8xf32> to vector<8x1xf32>
    %c0_29 = arith.constant 0 : index
    %c0_30 = arith.constant 0 : index
    %54 = vector.load %arg10[%c0_29, %c0_30] : memref<1x1xf32, #tpu.memory_space<vmem>>, vector<1x1xf32>
    %55 = vector.broadcast %54 : vector<1x1xf32> to vector<8x1xf32>
    %56 = arith.addf %53, %55 : vector<8x1xf32>
    %c0_31 = arith.constant 0 : index
    %c0_32 = arith.constant 0 : index
    %57 = vector.load %arg11[%c0_31, %c0_32] : memref<8x1xf32, #tpu.memory_space<vmem>>, vector<8x1xf32>
    tpu.vector_store %arg11[%c0_31, %c0_32], %56 {strides = array<i32>} : memref<8x1xf32, #tpu.memory_space<vmem>>, vector<8x1xf32>,
    return
  }
  func.func @transform_0(%arg0: i32) -> (i32, i32) {
    %c0_i32 = arith.constant 0 : i32
    %c0_i32_0 = arith.constant 0 : i32
    return %arg0, %c0_i32 : i32, i32
  }
  func.func @transform_1(%arg0: i32) -> (i32, i32) {
    %c0_i32 = arith.constant 0 : i32
    %c0_i32_0 = arith.constant 0 : i32
    %c0_i32_1 = arith.constant 0 : i32
    return %c0_i32, %c0_i32_0 : i32, i32
  }
  func.func @transform_2(%arg0: i32) -> (i32, i32) {
    %c0_i32 = arith.constant 0 : i32
    %c0_i32_0 = arith.constant 0 : i32
    %c0_i32_1 = arith.constant 0 : i32
    return %c0_i32, %c0_i32_0 : i32, i32
  }
  func.func @transform_3(%arg0: i32) -> (i32, i32) {
    %c0_i32 = arith.constant 0 : i32
    %c0_i32_0 = arith.constant 0 : i32
    %c0_i32_1 = arith.constant 0 : i32
    return %c0_i32, %c0_i32_0 : i32, i32
  }
  func.func @transform_4(%arg0: i32) -> (i32, i32) {
    %c0_i32 = arith.constant 0 : i32
    %c0_i32_0 = arith.constant 0 : i32
    %c0_i32_1 = arith.constant 0 : i32
    return %c0_i32, %c0_i32_0 : i32, i32
  }
  func.func @transform_5(%arg0: i32) -> (i32, i32) {
    %c0_i32 = arith.constant 0 : i32
    %c0_i32_0 = arith.constant 0 : i32
    %c0_i32_1 = arith.constant 0 : i32
    return %c0_i32, %c0_i32_0 : i32, i32
  }
  func.func @transform_6(%arg0: i32) -> (i32, i32) {
    %c0_i32 = arith.constant 0 : i32
    %c0_i32_0 = arith.constant 0 : i32
    %c0_i32_1 = arith.constant 0 : i32
    return %c0_i32, %c0_i32_0 : i32, i32
  }
  func.func @transform_7(%arg0: i32) -> (i32, i32) {
    %c0_i32 = arith.constant 0 : i32
    %c0_i32_0 = arith.constant 0 : i32
    %c0_i32_1 = arith.constant 0 : i32
    return %c0_i32, %c0_i32_0 : i32, i32
  }
  func.func @transform_8(%arg0: i32) -> (i32, i32) {
    %c0_i32 = arith.constant 0 : i32
    %c0_i32_0 = arith.constant 0 : i32
    %c0_i32_1 = arith.constant 0 : i32
    return %c0_i32, %c0_i32_0 : i32, i32
  }
  func.func @transform_9(%arg0: i32) -> (i32, i32) {
    %c0_i32 = arith.constant 0 : i32
    %c0_i32_0 = arith.constant 0 : i32
    %c0_i32_1 = arith.constant 0 : i32
    return %c0_i32, %c0_i32_0 : i32, i32
  }
  func.func @transform_10(%arg0: i32) -> (i32, i32) {
    %c0_i32 = arith.constant 0 : i32
    %c0_i32_0 = arith.constant 0 : i32
    return %arg0, %c0_i32 : i32, i32
  }
  func.func @transform_11(%arg0: i32) -> (i32, i32) {
    %c0_i32 = arith.constant 0 : i32
    %c0_i32_0 = arith.constant 0 : i32
    return %arg0, %c0_i32 : i32, i32
  }
}

</mosaic_0001>

<llo_original>
// kernel: tpu_custom_call.1
$region0: #{tpu_custom_call.1}
  #allocation0 [shape = 'u32[]', space=smem, size = 0x4, offset = 0x4, fixed_abs, tag = 'smem constant byte address 0x4 - core index']
  #allocation1 [shape = 'u32[144,128]{1,0:T(1,128)}', space=vmem, size = 0x12000, scoped, tag = 'internal scratch']
  #allocation2 [shape = 'f32[1,1]{1,0:T(1,128)S(1)}', space=vmem, size = 0x200, scoped, tag = 'scoped memory for tpu_custom_call.1']
  %s0 = inlined_call_operand.hbm [shape: f32[16,32], index: 0, kind: input, shape index: {}]
  %s1 = inlined_call_operand.hbm [shape: f32[32,32], index: 1, kind: input, shape index: {}]
  %s2 = inlined_call_operand.vmem [shape: f32[1,32], index: 2, kind: input, shape index: {}]
  %s3 = inlined_call_operand.vmem [shape: f32[1,32], index: 3, kind: input, shape index: {}]
  %s4 = inlined_call_operand.hbm [shape: f32[32,32], index: 4, kind: input, shape index: {}]
  %s5 = inlined_call_operand.vmem [shape: f32[1,32], index: 5, kind: input, shape index: {}]
  %s6 = inlined_call_operand.vmem [shape: f32[1,32], index: 6, kind: input, shape index: {}]
  %s7 = inlined_call_operand.vmem [shape: f32[1,32], index: 7, kind: input, shape index: {}]
  %s8 = inlined_call_operand.vmem [shape: f32[1,32], index: 8, kind: input, shape index: {}]
  %s9 = inlined_call_operand.<no memory space> [shape: f32[1,1], index: 9, kind: input, shape index: {}]
  %s10 = inlined_call_operand.vmem [shape: f32[16,1], index: 10, kind: output, shape index: {0}]
  %s11 = inlined_call_operand.hbm [shape: f32[16,32], index: 11, kind: output, shape index: {1}]
  %12 = xla_tuple %s10, %s11
  %s13 = sld [smem:[#allocation0]]
  $region93: #{tpu_custom_call.1} parent=0
    _
  %s15 = ssub.s32 1, %s13
  %s16 = scalar_select 0, %s15, %s13
  %v17 = vstv %s9
  %18 = vst [vmem:[#allocation2] sm:$0x1] %v17
  $region1: #{tpu_custom_call.1} parent=0
    #allocation3 [shape = 'u8[8192]{0}', space=vmem, size = 0x2000, scoped, tag = 'input window, operand 0']
    #allocation4 [shape = 's32[2]{0}', space=sflag, size = 0x8, scoped, tag = 'scoped memory for tpu_custom_call.1']
    #allocation5 [shape = 's32[2]{0}', space=sflag, size = 0x8, scoped, tag = 'scoped memory for tpu_custom_call.1']
    #allocation6 [shape = 'u8[16384]{0}', space=vmem, size = 0x4000, scoped, tag = 'input window, operand 1, single buffered']
    #allocation7 [shape = 's32[1]{0}', space=sflag, size = 0x4, scoped, tag = 'scoped memory for tpu_custom_call.1']
    #allocation8 [shape = 'u8[16384]{0}', space=vmem, size = 0x4000, scoped, tag = 'input window, operand 4, single buffered']
    #allocation9 [shape = 'u8[8192]{0}', space=vmem, size = 0x2000, scoped, tag = 'output window, operand 1']
    %19 = vsyncpa [#allocation4], 0
    %s20 = scalar_lea.sflag [#allocation4], 1
    %21 = vsyncpa %s20, 0
    %22 = vsyncpa [#allocation7], 0
    %23 = vsyncpa [#allocation5], 0
    %s24 = scalar_lea.sflag [#allocation5], 1
    %25 = vsyncpa %s24, 0
    loop: start=0, step=1, limit=4
    $region2: #{tpu_custom_call.1} parent=1 // loop_pre_header
      _
    $region3: #{tpu_custom_call.1} parent=1 // loop_header
      %s27 = sphi 0, %s31
      %p28 = scmp.ge.s32.totalorder %s27, 4
      %s37 = sphi 0, %s39
      %s40 = sphi 0, %s37
      %s41 = sphi 0, %s40
      %s57 = sphi 0, %s41
      %s61 = sphi 0, %s61
      %s63 = sphi 0, %s61
      %s64 = sphi 0, %s63
      %s78 = sphi 0, %s64
      %s82 = sphi 0, %s82
      %s84 = sphi 0, %s82
      %s85 = sphi 0, %s84
      %s99 = sphi 0, %s85
      %s103 = sphi 0, %s103
      %s105 = sphi 0, %s103
      %s106 = sphi 0, %s105
      %s120 = sphi 0, %s106
      %s124 = sphi 0, %s124
      %s126 = sphi 0, %s124
      %s127 = sphi 0, %s126
      %s141 = sphi 0, %s127
      %s145 = sphi 0, %s145
      %s147 = sphi 0, %s145
      %s148 = sphi 0, %s147
      %s162 = sphi 0, %s148
      %s166 = sphi 0, %s166
      %s168 = sphi 0, %s166
      %s169 = sphi 0, %s168
      %s183 = sphi 0, %s169
      %s187 = sphi 0, %s187
      %s189 = sphi 0, %s187
      %s190 = sphi 0, %s189
      %s204 = sphi 0, %s190
      %s208 = sphi 0, %s208
      %s210 = sphi 0, %s208
      %s211 = sphi 0, %s210
      %s225 = sphi 0, %s211
      %s229 = sphi 0, %s229
      %s231 = sphi 0, %s229
      %s232 = sphi 0, %s231
      %s246 = sphi 0, %s232
      %s252 = sphi 0, %s254
      %s255 = sphi 0, %s252
      %s256 = sphi 0, %s255
      %s272 = sphi 0, %s256
      %s278 = sphi 0, %s280
      %s281 = sphi 0, %s278
      %s282 = sphi 0, %s281
      %s298 = sphi 0, %s282
    $region4: #{tpu_custom_call.1} parent=1 // loop_header_branch
      %30 = sbr.rel (%p28) target = $region8
    $region5: #{tpu_custom_call.1} parent=1 // loop_body
      %s32 = ssub.s32 %s27, 1
      %s33 = ssub.s32 %s27, 2
      %s34 = sadd.s32 %s27, 1
      %s35 = ssub.s32 %s27, %s34
      %p36 = scmp.eq.s32.totalorder %s35, 0
      %s38 = sadd.s32 %s37, 1
      %s39 = scalar_select %p36, %s37, %s38
      %p42 = pneg %p36
      %p43 = scmp.eq.s32.totalorder %s27, 1
      %p44 = por %p42, %p43
      %p45 = scmp.ne.s32.totalorder %s37, %s40
      %p46 = scmp.eq.s32.totalorder %s27, 0
      %p47 = por %p45, %p46
      %p48 = scmp.ne.s32.totalorder %s37, %s40
      %p49 = scmp.eq.s32.totalorder %s32, 1
      %p50 = por %p48, %p49
      %p51 = scmp.ne.s32.totalorder %s40, %s41
      %p52 = scmp.eq.s32.totalorder %s32, 0
      %p53 = por %p51, %p52
      %p54 = scmp.ne.s32.totalorder %s40, %s41
      %p55 = scmp.eq.s32.totalorder %s33, 1
      %p56 = por %p54, %p55
      %p58 = scmp.ne.s32.totalorder %s41, %s57
      %p59 = scmp.eq.s32.totalorder %s33, 0
      %p60 = por %p58, %p59
      %s62 = sadd.s32 %s61, 1
      %p65 = scmp.eq.s32.totalorder %s27, 1
      %p66 = scmp.ne.s32.totalorder %s61, %s63
      %p67 = scmp.eq.s32.totalorder %s27, 0
      %p68 = por %p66, %p67
      %p69 = scmp.ne.s32.totalorder %s61, %s63
      %p70 = scmp.eq.s32.totalorder %s32, 1
      %p71 = por %p69, %p70
      %p72 = scmp.ne.s32.totalorder %s63, %s64
      %p73 = scmp.eq.s32.totalorder %s32, 0
      %p74 = por %p72, %p73
      %p75 = scmp.ne.s32.totalorder %s63, %s64
      %p76 = scmp.eq.s32.totalorder %s33, 1
      %p77 = por %p75, %p76
      %p79 = scmp.ne.s32.totalorder %s64, %s78
      %p80 = scmp.eq.s32.totalorder %s33, 0
      %p81 = por %p79, %p80
      %s83 = sadd.s32 %s82, 1
      %p86 = scmp.eq.s32.totalorder %s27, 1
      %p87 = scmp.ne.s32.totalorder %s82, %s84
      %p88 = scmp.eq.s32.totalorder %s27, 0
      %p89 = por %p87, %p88
      %p90 = scmp.ne.s32.totalorder %s82, %s84
      %p91 = scmp.eq.s32.totalorder %s32, 1
      %p92 = por %p90, %p91
      %p93 = scmp.ne.s32.totalorder %s84, %s85
      %p94 = scmp.eq.s32.totalorder %s32, 0
      %p95 = por %p93, %p94
      %p96 = scmp.ne.s32.totalorder %s84, %s85
      %p97 = scmp.eq.s32.totalorder %s33, 1
      %p98 = por %p96, %p97
      %p100 = scmp.ne.s32.totalorder %s85, %s99
      %p101 = scmp.eq.s32.totalorder %s33, 0
      %p102 = por %p100, %p101
      %s104 = sadd.s32 %s103, 1
      %p107 = scmp.eq.s32.totalorder %s27, 1
      %p108 = scmp.ne.s32.totalorder %s103, %s105
      %p109 = scmp.eq.s32.totalorder %s27, 0
      %p110 = por %p108, %p109
      %p111 = scmp.ne.s32.totalorder %s103, %s105
      %p112 = scmp.eq.s32.totalorder %s32, 1
      %p113 = por %p111, %p112
      %p114 = scmp.ne.s32.totalorder %s105, %s106
      %p115 = scmp.eq.s32.totalorder %s32, 0
      %p116 = por %p114, %p115
      %p117 = scmp.ne.s32.totalorder %s105, %s106
      %p118 = scmp.eq.s32.totalorder %s33, 1
      %p119 = por %p117, %p118
      %p121 = scmp.ne.s32.totalorder %s106, %s120
      %p122 = scmp.eq.s32.totalorder %s33, 0
      %p123 = por %p121, %p122
      %s125 = sadd.s32 %s124, 1
      %p128 = scmp.eq.s32.totalorder %s27, 1
      %p129 = scmp.ne.s32.totalorder %s124, %s126
      %p130 = scmp.eq.s32.totalorder %s27, 0
      %p131 = por %p129, %p130
      %p132 = scmp.ne.s32.totalorder %s124, %s126
      %p133 = scmp.eq.s32.totalorder %s32, 1
      %p134 = por %p132, %p133
      %p135 = scmp.ne.s32.totalorder %s126, %s127
      %p136 = scmp.eq.s32.totalorder %s32, 0
      %p137 = por %p135, %p136
      %p138 = scmp.ne.s32.totalorder %s126, %s127
      %p139 = scmp.eq.s32.totalorder %s33, 1
      %p140 = por %p138, %p139
      %p142 = scmp.ne.s32.totalorder %s127, %s141
      %p143 = scmp.eq.s32.totalorder %s33, 0
      %p144 = por %p142, %p143
      %s146 = sadd.s32 %s145, 1
      %p149 = scmp.eq.s32.totalorder %s27, 1
      %p150 = scmp.ne.s32.totalorder %s145, %s147
      %p151 = scmp.eq.s32.totalorder %s27, 0
      %p152 = por %p150, %p151
      %p153 = scmp.ne.s32.totalorder %s145, %s147
      %p154 = scmp.eq.s32.totalorder %s32, 1
      %p155 = por %p153, %p154
      %p156 = scmp.ne.s32.totalorder %s147, %s148
      %p157 = scmp.eq.s32.totalorder %s32, 0
      %p158 = por %p156, %p157
      %p159 = scmp.ne.s32.totalorder %s147, %s148
      %p160 = scmp.eq.s32.totalorder %s33, 1
      %p161 = por %p159, %p160
      %p163 = scmp.ne.s32.totalorder %s148, %s162
      %p164 = scmp.eq.s32.totalorder %s33, 0
      %p165 = por %p163, %p164
      %s167 = sadd.s32 %s166, 1
      %p170 = scmp.eq.s32.totalorder %s27, 1
      %p171 = scmp.ne.s32.totalorder %s166, %s168
      %p172 = scmp.eq.s32.totalorder %s27, 0
      %p173 = por %p171, %p172
      %p174 = scmp.ne.s32.totalorder %s166, %s168
      %p175 = scmp.eq.s32.totalorder %s32, 1
      %p176 = por %p174, %p175
      %p177 = scmp.ne.s32.totalorder %s168, %s169
      %p178 = scmp.eq.s32.totalorder %s32, 0
      %p179 = por %p177, %p178
      %p180 = scmp.ne.s32.totalorder %s168, %s169
      %p181 = scmp.eq.s32.totalorder %s33, 1
      %p182 = por %p180, %p181
      %p184 = scmp.ne.s32.totalorder %s169, %s183
      %p185 = scmp.eq.s32.totalorder %s33, 0
      %p186 = por %p184, %p185
      %s188 = sadd.s32 %s187, 1
      %p191 = scmp.eq.s32.totalorder %s27, 1
      %p192 = scmp.ne.s32.totalorder %s187, %s189
      %p193 = scmp.eq.s32.totalorder %s27, 0
      %p194 = por %p192, %p193
      %p195 = scmp.ne.s32.totalorder %s187, %s189
      %p196 = scmp.eq.s32.totalorder %s32, 1
      %p197 = por %p195, %p196
      %p198 = scmp.ne.s32.totalorder %s189, %s190
      %p199 = scmp.eq.s32.totalorder %s32, 0
      %p200 = por %p198, %p199
      %p201 = scmp.ne.s32.totalorder %s189, %s190
      %p202 = scmp.eq.s32.totalorder %s33, 1
      %p203 = por %p201, %p202
      %p205 = scmp.ne.s32.totalorder %s190, %s204
      %p206 = scmp.eq.s32.totalorder %s33, 0
      %p207 = por %p205, %p206
      %s209 = sadd.s32 %s208, 1
      %p212 = scmp.eq.s32.totalorder %s27, 1
      %p213 = scmp.ne.s32.totalorder %s208, %s210
      %p214 = scmp.eq.s32.totalorder %s27, 0
      %p215 = por %p213, %p214
      %p216 = scmp.ne.s32.totalorder %s208, %s210
      %p217 = scmp.eq.s32.totalorder %s32, 1
      %p218 = por %p216, %p217
      %p219 = scmp.ne.s32.totalorder %s210, %s211
      %p220 = scmp.eq.s32.totalorder %s32, 0
      %p221 = por %p219, %p220
      %p222 = scmp.ne.s32.totalorder %s210, %s211
      %p223 = scmp.eq.s32.totalorder %s33, 1
      %p224 = por %p222, %p223
      %p226 = scmp.ne.s32.totalorder %s211, %s225
      %p227 = scmp.eq.s32.totalorder %s33, 0
      %p228 = por %p226, %p227
      %s230 = sadd.s32 %s229, 1
      %p233 = scmp.eq.s32.totalorder %s27, 1
      %p234 = scmp.ne.s32.totalorder %s229, %s231
      %p235 = scmp.eq.s32.totalorder %s27, 0
      %p236 = por %p234, %p235
      %p237 = scmp.ne.s32.totalorder %s229, %s231
      %p238 = scmp.eq.s32.totalorder %s32, 1
      %p239 = por %p237, %p238
      %p240 = scmp.ne.s32.totalorder %s231, %s232
      %p241 = scmp.eq.s32.totalorder %s32, 0
      %p242 = por %p240, %p241
      %p243 = scmp.ne.s32.totalorder %s231, %s232
      %p244 = scmp.eq.s32.totalorder %s33, 1
      %p245 = por %p243, %p244
      %p247 = scmp.ne.s32.totalorder %s232, %s246
      %p248 = scmp.eq.s32.totalorder %s33, 0
      %p249 = por %p247, %p248
      %s250 = ssub.s32 %s27, %s34
      %p251 = scmp.eq.s32.totalorder %s250, 0
      %s253 = sadd.s32 %s252, 1
      %s254 = scalar_select %p251, %s252, %s253
      %p257 = pneg %p251
      %p258 = scmp.eq.s32.totalorder %s27, 1
      %p259 = por %p257, %p258
      %p260 = scmp.ne.s32.totalorder %s252, %s255
      %p261 = scmp.eq.s32.totalorder %s27, 0
      %p262 = por %p260, %p261
      %p263 = scmp.ne.s32.totalorder %s252, %s255
      %p264 = scmp.eq.s32.totalorder %s32, 1
      %p265 = por %p263, %p264
      %p266 = scmp.ne.s32.totalorder %s255, %s256
      %p267 = scmp.eq.s32.totalorder %s32, 0
      %p268 = por %p266, %p267
      %p269 = scmp.ne.s32.totalorder %s255, %s256
      %p270 = scmp.eq.s32.totalorder %s33, 1
      %p271 = por %p269, %p270
      %p273 = scmp.ne.s32.totalorder %s256, %s272
      %p274 = scmp.eq.s32.totalorder %s33, 0
      %p275 = por %p273, %p274
      %s276 = ssub.s32 %s27, %s34
      %p277 = scmp.eq.s32.totalorder %s276, 0
      %s279 = sadd.s32 %s278, 1
      %s280 = scalar_select %p277, %s278, %s279
      %p283 = pneg %p277
      %p284 = scmp.eq.s32.totalorder %s27, 1
      %p285 = por %p283, %p284
      %p286 = scmp.ne.s32.totalorder %s278, %s281
      %p287 = scmp.eq.s32.totalorder %s27, 0
      %p288 = por %p286, %p287
      %p289 = scmp.ne.s32.totalorder %s278, %s281
      %p290 = scmp.eq.s32.totalorder %s32, 1
      %p291 = por %p289, %p290
      %p292 = scmp.ne.s32.totalorder %s281, %s282
      %p293 = scmp.eq.s32.totalorder %s32, 0
      %p294 = por %p292, %p293
      %p295 = scmp.ne.s32.totalorder %s281, %s282
      %p296 = scmp.eq.s32.totalorder %s33, 1
      %p297 = por %p295, %p296
      %p299 = scmp.ne.s32.totalorder %s282, %s298
      %p300 = scmp.eq.s32.totalorder %s33, 0
      %p301 = por %p299, %p300
      %p302 = scmp.le.s32.totalorder 1, %s27
      %p303 = scmp.lt.s32.totalorder %s27, 3
      %p304 = pnand %p302, %p303
      %p305 = pneg %p304
      // Predicated region
      $region9: #{tpu_custom_call.1} parent=5 // pred_check
        _
      $region10: #{tpu_custom_call.1} parent=5 // pred_check_branch
        %307 = sbr.rel (%p304) target = $region12
      $region11: #{tpu_custom_call.1} parent=5 // pred_region
        %s308 = ssub.s32 %s27, 1
        // Predicated region
        $region13: #{tpu_custom_call.1} parent=11 // pred_check
          %p309 = pneg %p74
        $region14: #{tpu_custom_call.1} parent=11 // pred_check_branch
          %311 = sbr.rel (%p309) target = $region16
        $region15: #{tpu_custom_call.1} parent=11 // pred_region
          %s313 = ssub.s32 512, 512
          %314 = vsyncadd [#allocation7], %s313
          %s315 = sshll.u32 [#allocation6], 4
          %s316 = int_to_ptr.vmem [resolvable:$true] %s315
          %321 = dma.hbm_to_vmem [thread:$0]  %s1, 512, %s316, [#allocation7], 128, 128, 8
        $region16: #{tpu_custom_call.1} parent=11 // pred_fallthru
          _
        // Predicated region
        $region17: #{tpu_custom_call.1} parent=11 // pred_check
          %p322 = pneg %p95
        $region18: #{tpu_custom_call.1} parent=11 // pred_check_branch
          %324 = sbr.rel (%p322) target = $region20
        $region19: #{tpu_custom_call.1} parent=11 // pred_region
          _
        $region20: #{tpu_custom_call.1} parent=11 // pred_fallthru
          _
        // Predicated region
        $region21: #{tpu_custom_call.1} parent=11 // pred_check
          %p325 = pneg %p116
        $region22: #{tpu_custom_call.1} parent=11 // pred_check_branch
          %327 = sbr.rel (%p325) target = $region24
        $region23: #{tpu_custom_call.1} parent=11 // pred_region
          _
        $region24: #{tpu_custom_call.1} parent=11 // pred_fallthru
          _
        // Predicated region
        $region25: #{tpu_custom_call.1} parent=11 // pred_check
          %p328 = pneg %p137
        $region26: #{tpu_custom_call.1} parent=11 // pred_check_branch
          %330 = sbr.rel (%p328) target = $region28
        $region27: #{tpu_custom_call.1} parent=11 // pred_region
          %s332 = ssub.s32 512, 512
          %333 = vsyncadd [#allocation7], %s332
          %s334 = sshll.u32 [#allocation8], 4
          %s335 = int_to_ptr.vmem [resolvable:$true] %s334
          %340 = dma.hbm_to_vmem [thread:$0]  %s4, 512, %s335, [#allocation7], 128, 128, 8
        $region28: #{tpu_custom_call.1} parent=11 // pred_fallthru
          _
        // Predicated region
        $region29: #{tpu_custom_call.1} parent=11 // pred_check
          %p341 = pneg %p158
        $region30: #{tpu_custom_call.1} parent=11 // pred_check_branch
          %343 = sbr.rel (%p341) target = $region32
        $region31: #{tpu_custom_call.1} parent=11 // pred_region
          _
        $region32: #{tpu_custom_call.1} parent=11 // pred_fallthru
          _
        // Predicated region
        $region33: #{tpu_custom_call.1} parent=11 // pred_check
          %p344 = pneg %p179
        $region34: #{tpu_custom_call.1} parent=11 // pred_check_branch
          %346 = sbr.rel (%p344) target = $region36
        $region35: #{tpu_custom_call.1} parent=11 // pred_region
          _
        $region36: #{tpu_custom_call.1} parent=11 // pred_fallthru
          _
        // Predicated region
        $region37: #{tpu_custom_call.1} parent=11 // pred_check
          %p347 = pneg %p200
        $region38: #{tpu_custom_call.1} parent=11 // pred_check_branch
          %349 = sbr.rel (%p347) target = $region40
        $region39: #{tpu_custom_call.1} parent=11 // pred_region
          _
        $region40: #{tpu_custom_call.1} parent=11 // pred_fallthru
          _
        // Predicated region
        $region41: #{tpu_custom_call.1} parent=11 // pred_check
          %p350 = pneg %p221
        $region42: #{tpu_custom_call.1} parent=11 // pred_check_branch
          %352 = sbr.rel (%p350) target = $region44
        $region43: #{tpu_custom_call.1} parent=11 // pred_region
          _
        $region44: #{tpu_custom_call.1} parent=11 // pred_fallthru
          _
        // Predicated region
        $region45: #{tpu_custom_call.1} parent=11 // pred_check
          %p353 = pneg %p242
        $region46: #{tpu_custom_call.1} parent=11 // pred_check_branch
          %355 = sbr.rel (%p353) target = $region48
        $region47: #{tpu_custom_call.1} parent=11 // pred_region
          _
        $region48: #{tpu_custom_call.1} parent=11 // pred_fallthru
          _
      $region12: #{tpu_custom_call.1} parent=5 // pred_fallthru
        _
      %p356 = scmp.lt.s32.totalorder %s27, 2
      // Predicated region
      $region49: #{tpu_custom_call.1} parent=5 // pred_check
        %p357 = pneg %p356
      $region50: #{tpu_custom_call.1} parent=5 // pred_check_branch
        %359 = sbr.rel (%p357) target = $region52
      $region51: #{tpu_custom_call.1} parent=5 // pred_region
        // Predicated region
        $region53: #{tpu_custom_call.1} parent=51 // pred_check
          %p360 = pneg %p47
        $region54: #{tpu_custom_call.1} parent=51 // pred_check_branch
          %362 = sbr.rel (%p360) target = $region56
        $region55: #{tpu_custom_call.1} parent=51 // pred_region
          %s363 = sand.u32 %s37, 1
          %s364 = scalar_lea.sflag [#allocation4], %s363
          %s365 = sand.u32 %s37, 1
          %s366 = smul.addr %s365, 8
          %s367 = scalar_lea.vmem [#allocation3], %s366
          %s369 = ssub.s32 128, 128
          %370 = vsyncadd %s364, %s369
          %s371 = smul.addr %s27, 128
          %s372 = scalar_lea.hbm %s0, %s371
          %s374 = sshll.u32 %s367, 4
          %s375 = int_to_ptr.vmem [resolvable:$true] %s374
          %377 = dma.hbm_to_vmem [thread:$0]  %s372, 128, %s375, %s364
        $region56: #{tpu_custom_call.1} parent=51 // pred_fallthru
          _
      $region52: #{tpu_custom_call.1} parent=5 // pred_fallthru
        _
      %p378 = scmp.le.s32.totalorder 1, %s27
      %p379 = scmp.lt.s32.totalorder %s27, 3
      %p380 = pnand %p378, %p379
      %p381 = pneg %p380
      // Predicated region
      $region57: #{tpu_custom_call.1} parent=5 // pred_check
        _
      $region58: #{tpu_custom_call.1} parent=5 // pred_check_branch
        %383 = sbr.rel (%p380) target = $region60
      $region59: #{tpu_custom_call.1} parent=5 // pred_region
        %s384 = ssub.s32 %s27, 1
        %s385 = sand.u32 %s40, 1
        %s386 = scalar_lea.sflag [#allocation4], %s385
        %s387 = sand.u32 %s40, 1
        %s388 = smul.addr %s387, 8
        %s389 = scalar_lea.vmem [#allocation3], %s388
        // Predicated region
        $region61: #{tpu_custom_call.1} parent=59 // pred_check
          %p390 = pneg %p53
        $region62: #{tpu_custom_call.1} parent=59 // pred_check_branch
          %392 = sbr.rel (%p390) target = $region64
        $region63: #{tpu_custom_call.1} parent=59 // pred_region
          %393 = dma.done %s386, 128
        $region64: #{tpu_custom_call.1} parent=59 // pred_fallthru
          _
        // Predicated region
        $region65: #{tpu_custom_call.1} parent=59 // pred_check
          %p394 = pneg %p74
        $region66: #{tpu_custom_call.1} parent=59 // pred_check_branch
          %396 = sbr.rel (%p394) target = $region68
        $region67: #{tpu_custom_call.1} parent=59 // pred_region
          %397 = dma.done [#allocation7], 512
        $region68: #{tpu_custom_call.1} parent=59 // pred_fallthru
          _
        // Predicated region
        $region69: #{tpu_custom_call.1} parent=59 // pred_check
          %p398 = pneg %p137
        $region70: #{tpu_custom_call.1} parent=59 // pred_check_branch
          %400 = sbr.rel (%p398) target = $region72
        $region71: #{tpu_custom_call.1} parent=59 // pred_region
          %401 = dma.done [#allocation7], 512
        $region72: #{tpu_custom_call.1} parent=59 // pred_fallthru
          _
        %s402 = sand.u32 %s40, 1
        %s403 = scalar_lea.sflag [#allocation4], %s402
        %s404 = sand.u32 %s40, 1
        %s405 = smul.addr %s404, 8
        %s406 = scalar_lea.vmem [#allocation3], %s405
        %p407 = pneg %p53
        %p408 = pneg %p50
        %p409 = pneg %p74
        %p410 = pneg %p71
        %p411 = pneg %p95
        %p412 = pneg %p92
        %p413 = pneg %p116
        %p414 = pneg %p113
        %p415 = pneg %p137
        %p416 = pneg %p134
        %p417 = pneg %p158
        %p418 = pneg %p155
        %p419 = pneg %p179
        %p420 = pneg %p176
        %p421 = pneg %p200
        %p422 = pneg %p197
        %p423 = pneg %p221
        %p424 = pneg %p218
        %p425 = pneg %p242
        %p426 = pneg %p239
        %p427 = pneg %p268
        %p428 = pneg %p265
        %p429 = scmp.lt.s32.totalorder %s32, 1
        %s430 = scalar_select %p429, %s32, 1
        %s431 = smul.addr %s430, 8
        %s432 = scalar_lea.vmem %s10, %s431
        %p433 = pneg %p294
        %p434 = pneg %p291
        %s435 = sand.u32 %s281, 1
        %s436 = scalar_lea.sflag [#allocation5], %s435
        %s437 = sand.u32 %s281, 1
        %s438 = smul.addr %s437, 8
        %s439 = scalar_lea.vmem [#allocation9], %s438
        %p440 = scmp.lt.s32.totalorder %s32, 1
        %s441 = scalar_select %p440, %s32, 1
        %s442 = smul.addr %s441, 8
        %s443 = scalar_lea.vmem %s10, %s442
        %v444 = vld [vmem:[%s389] sm:$0xff]
        %v445 = vld [vmem:[#allocation6] sm:$0xff]
        %v446 = vld [vmem:[#allocation6 + $0x8] sm:$0xff]
        %v447 = vld [vmem:[#allocation6 + $0x10] sm:$0xff]
        %v448 = vld [vmem:[#allocation6 + $0x18] sm:$0xff]
        %v449 = vld [vmem:[%s2] sm:$0x1]
        %v451 = vlaneseq
        %v452 = vshrl.u32 %v451, 7
        %v453 = vsub.s32 0, %v452
        %v454 = vrot.slane %v449, %v453
        %vm456 = vcmask 261120
        %v458 = vsel %vm456, %v444, 0
        %460 = vmatprep.subr.mxu0 0.0
        %461 = vmatpush1.msra.mxu0 0.0
        %462 = vmatprep.subr.mxu0 0.0
        %463 = vmatpush1.msra.mxu0 0.0
        %464 = vmatprep.subr.mxu0 0.0
        %465 = vmatpush1.msra.mxu0 0.0
        %466 = vmatprep.subr.mxu0 0.0
        %467 = vmatpush1.msra.mxu0 0.0
        %468 = vmatprep.subr.mxu0 0.0
        %469 = vmatpush1.msra.mxu0 0.0
        %470 = vmatprep.subr.mxu0 0.0
        %471 = vmatpush1.msra.mxu0 0.0
        %472 = vmatprep.subr.mxu0 0.0
        %473 = vmatpush1.msra.mxu0 0.0
        %474 = vmatprep.subr.mxu0 0.0
        %475 = vmatpush1.msra.mxu0 0.0
        %476 = vmatprep.subr.mxu0 0.0
        %477 = vmatpush1.msra.mxu0 0.0
        %478 = vmatprep.subr.mxu0 0.0
        %479 = vmatpush1.msra.mxu0 0.0
        %480 = vmatprep.subr.mxu0 0.0
        %481 = vmatpush1.msra.mxu0 0.0
        %482 = vmatprep.subr.mxu0 0.0
        %483 = vmatpush1.msra.mxu0 0.0
        %484 = vmatprep.subr.mxu0 0.0
        %485 = vmatpush1.msra.mxu0 %v448
        %486 = vmatprep.subr.mxu0 0.0
        %487 = vmatpush1.msra.mxu0 %v447
        %488 = vmatprep.subr.mxu0 0.0
        %489 = vmatpush1.msra.mxu0 %v446
        %490 = vmatprep.subr.mxu0 0.0
        %491 = vmatpush1.msra.mxu0 %v445
        %492 = vmatprep.subr.mxu0 0.0
        %493 = vmatpush2.msra.mxu0 0.0
        %494 = vmatprep.subr.mxu0 0.0
        %495 = vmatpush2.msra.mxu0 0.0
        %496 = vmatprep.subr.mxu0 0.0
        %497 = vmatpush2.msra.mxu0 0.0
        %498 = vmatprep.subr.mxu0 0.0
        %499 = vmatpush2.msra.mxu0 0.0
        %500 = vmatprep.subr.mxu0 0.0
        %501 = vmatpush2.msra.mxu0 0.0
        %502 = vmatprep.subr.mxu0 0.0
        %503 = vmatpush2.msra.mxu0 0.0
        %504 = vmatprep.subr.mxu0 0.0
        %505 = vmatpush2.msra.mxu0 0.0
        %506 = vmatprep.subr.mxu0 0.0
        %507 = vmatpush2.msra.mxu0 0.0
        %508 = vmatprep.subr.mxu0 0.0
        %509 = vmatpush2.msra.mxu0 0.0
        %510 = vmatprep.subr.mxu0 0.0
        %511 = vmatpush2.msra.mxu0 0.0
        %512 = vmatprep.subr.mxu0 0.0
        %513 = vmatpush2.msra.mxu0 0.0
        %514 = vmatprep.subr.mxu0 0.0
        %515 = vmatpush2.msra.mxu0 0.0
        %516 = vmatprep.subr.mxu0 0.0
        %517 = vmatpush2.msra.mxu0 0.0
        %518 = vmatprep.subr.mxu0 0.0
        %519 = vmatpush2.msra.mxu0 0.0
        %520 = vmatprep.subr.mxu0 0.0
        %521 = vmatpush2.msra.mxu0 0.0
        %522 = vmatprep.subr.mxu0 0.0
        %523 = vmatpush2.msra.mxu0 0.0
        %524 = vmatprep.mubr.f32.mxu0 0.0
        %525 = vmatmul.mubr.f32.gmra.mxu0 %v458
        %v526 = vpop.f32.mrf.mxu0
        %v527 = vadd.f32 %v454, %v526
        %v528 = vpop.f32.mrf.mxu0
        %529 = vdwg.mxu0
        %v530 = vld [vmem:[%s3] sm:$0x1]
        %vm531 = vcmask 253952
        %v532 = vsel %vm531, %v530, 0.0
        %533 = vadd.xlane.f32.xlu0 %v532
        %v534 = vpop.xlane.xlu0 %533
        %v535 = vrot.slane %v534, 4
        %v536 = vadd.f32 %v534, %v535
        %v537 = vrot.slane %v536, 2
        %v538 = vadd.f32 %v536, %v537
        %v539 = vrot.slane %v538, 1
        %v540 = vadd.f32 %v538, %v539
        %s541 = vtos %v540
        %v542 = vstv %s541
        %v543 = vrcp.pop %v542
        %s544 = vtos %v543
        %s545 = smul.f32 8.0, %s544
        %v546 = vstv %s545
        %v547 = vmul.f32 %v530, %v546
        %v549 = vlaneseq
        %v550 = vshrl.u32 %v549, 7
        %v551 = vsub.s32 0, %v550
        %v552 = vrot.slane %v547, %v551
        %v554 = vmul.f32 %v527, %v552
        %v555 = vld [vmem:[#allocation8] sm:$0xff]
        %v556 = vld [vmem:[#allocation8 + $0x8] sm:$0xff]
        %v557 = vld [vmem:[#allocation8 + $0x10] sm:$0xff]
        %v558 = vld [vmem:[#allocation8 + $0x18] sm:$0xff]
        %v559 = vld [vmem:[%s5] sm:$0x1]
        %v561 = vlaneseq
        %v562 = vshrl.u32 %v561, 7
        %v563 = vsub.s32 0, %v562
        %v564 = vrot.slane %v559, %v563
        %v567 = vsel %vm456, %v554, 0
        %569 = vmatprep.subr.mxu0 0.0
        %570 = vmatpush1.msra.mxu0 0.0
        %571 = vmatprep.subr.mxu0 0.0
        %572 = vmatpush1.msra.mxu0 0.0
        %573 = vmatprep.subr.mxu0 0.0
        %574 = vmatpush1.msra.mxu0 0.0
        %575 = vmatprep.subr.mxu0 0.0
        %576 = vmatpush1.msra.mxu0 0.0
        %577 = vmatprep.subr.mxu0 0.0
        %578 = vmatpush1.msra.mxu0 0.0
        %579 = vmatprep.subr.mxu0 0.0
        %580 = vmatpush1.msra.mxu0 0.0
        %581 = vmatprep.subr.mxu0 0.0
        %582 = vmatpush1.msra.mxu0 0.0
        %583 = vmatprep.subr.mxu0 0.0
        %584 = vmatpush1.msra.mxu0 0.0
        %585 = vmatprep.subr.mxu0 0.0
        %586 = vmatpush1.msra.mxu0 0.0
        %587 = vmatprep.subr.mxu0 0.0
        %588 = vmatpush1.msra.mxu0 0.0
        %589 = vmatprep.subr.mxu0 0.0
        %590 = vmatpush1.msra.mxu0 0.0
        %591 = vmatprep.subr.mxu0 0.0
        %592 = vmatpush1.msra.mxu0 0.0
        %593 = vmatprep.subr.mxu0 0.0
        %594 = vmatpush1.msra.mxu0 %v558
        %595 = vmatprep.subr.mxu0 0.0
        %596 = vmatpush1.msra.mxu0 %v557
        %597 = vmatprep.subr.mxu0 0.0
        %598 = vmatpush1.msra.mxu0 %v556
        %599 = vmatprep.subr.mxu0 0.0
        %600 = vmatpush1.msra.mxu0 %v555
        %601 = vmatprep.subr.mxu0 0.0
        %602 = vmatpush2.msra.mxu0 0.0
        %603 = vmatprep.subr.mxu0 0.0
        %604 = vmatpush2.msra.mxu0 0.0
        %605 = vmatprep.subr.mxu0 0.0
        %606 = vmatpush2.msra.mxu0 0.0
        %607 = vmatprep.subr.mxu0 0.0
        %608 = vmatpush2.msra.mxu0 0.0
        %609 = vmatprep.subr.mxu0 0.0
        %610 = vmatpush2.msra.mxu0 0.0
        %611 = vmatprep.subr.mxu0 0.0
        %612 = vmatpush2.msra.mxu0 0.0
        %613 = vmatprep.subr.mxu0 0.0
        %614 = vmatpush2.msra.mxu0 0.0
        %615 = vmatprep.subr.mxu0 0.0
        %616 = vmatpush2.msra.mxu0 0.0
        %617 = vmatprep.subr.mxu0 0.0
        %618 = vmatpush2.msra.mxu0 0.0
        %619 = vmatprep.subr.mxu0 0.0
        %620 = vmatpush2.msra.mxu0 0.0
        %621 = vmatprep.subr.mxu0 0.0
        %622 = vmatpush2.msra.mxu0 0.0
        %623 = vmatprep.subr.mxu0 0.0
        %624 = vmatpush2.msra.mxu0 0.0
        %625 = vmatprep.subr.mxu0 0.0
        %626 = vmatpush2.msra.mxu0 0.0
        %627 = vmatprep.subr.mxu0 0.0
        %628 = vmatpush2.msra.mxu0 0.0
        %629 = vmatprep.subr.mxu0 0.0
        %630 = vmatpush2.msra.mxu0 0.0
        %631 = vmatprep.subr.mxu0 0.0
        %632 = vmatpush2.msra.mxu0 0.0
        %633 = vmatprep.mubr.f32.mxu0 0.0
        %634 = vmatmul.mubr.f32.gmra.mxu0 %v567
        %v635 = vpop.f32.mrf.mxu0
        %v636 = vadd.f32 %v564, %v635
        %v637 = vpop.f32.mrf.mxu0
        %638 = vdwg.mxu0
        %639 = vst.msk [vmem:[%s439] sm:$0xff] %vm456, %v636
        %v640 = vadd.f32 %v636, %v444
        %v641 = vsel %vm456, %v640, 0.0
        %642 = vadd.xlane.f32.xlu0 %v641
        %v643 = vpop.xlane.xlu0 %642
        %v644 = vrcp.pop 32.0
        %v645 = vmul.f32 %v643, %v644
        %v646 = vsub.f32 %v640, %v645
        %v647 = vmul.f32 %v646, %v646
        %v648 = vsel %vm456, %v647, 0.0
        %649 = vadd.xlane.f32.xlu0 %v648
        %v650 = vpop.xlane.xlu0 %649
        %v651 = vmul.f32 %v650, %v644
        %v652 = vadd.f32 %v651, 1e-12
        %v653 = vrsqrt.pop %v652
        %v654 = vmul.f32 %v646, %v653
        %v655 = vld [vmem:[%s6] sm:$0x1]
        %v657 = vlaneseq
        %v658 = vshrl.u32 %v657, 7
        %v659 = vsub.s32 0, %v658
        %v660 = vrot.slane %v655, %v659
        %v662 = vmul.f32 %v660, %v654
        %v663 = vld [vmem:[%s7] sm:$0x1]
        %v665 = vlaneseq
        %v666 = vshrl.u32 %v665, 7
        %v667 = vsub.s32 0, %v666
        %v668 = vrot.slane %v663, %v667
        %v670 = vadd.f32 %v662, %v668
        %v671 = vmax.f32 %v670, 0.0
        %v672 = vld [vmem:[%s8] sm:$0x1]
        %v674 = vlaneseq
        %v675 = vshrl.u32 %v674, 7
        %v676 = vsub.s32 0, %v675
        %v677 = vrot.slane %v672, %v676
        %v679 = vmul.f32 %v671, %v677
        %v680 = vsel %vm456, %v679, 0.0
        %681 = vadd.xlane.f32.xlu0 %v680
        %v682 = vpop.xlane.xlu0 %681
        %v683 = vld [vmem:[#allocation2] sm:$0x1]
        %v685 = vlaneseq
        %v686 = vshrl.u32 %v685, 7
        %v687 = vsub.s32 0, %v686
        %v688 = vrot.slane %v683, %v687
        %v690 = vadd.f32 %v682, %v688
        %vm691 = vcmask 7168
        %692 = vst.msk [vmem:[%s443] sm:$0xff] %vm691, %v690
        %p693 = scmp.lt.s32.totalorder %s32, 1
        %s694 = scalar_select %p693, %s32, 1
        %s695 = smul.addr %s694, 8
        %s696 = scalar_lea.vmem %s10, %s695
        %s697 = sand.u32 %s281, 1
        %s698 = scalar_lea.sflag [#allocation5], %s697
        %s699 = sand.u32 %s281, 1
        %s700 = smul.addr %s699, 8
        %s701 = scalar_lea.vmem [#allocation9], %s700
        // Predicated region
        $region73: #{tpu_custom_call.1} parent=59 // pred_check
          %p702 = pneg %p265
        $region74: #{tpu_custom_call.1} parent=59 // pred_check_branch
          %704 = sbr.rel (%p702) target = $region76
        $region75: #{tpu_custom_call.1} parent=59 // pred_region
          _
        $region76: #{tpu_custom_call.1} parent=59 // pred_fallthru
          _
        // Predicated region
        $region77: #{tpu_custom_call.1} parent=59 // pred_check
          %p705 = pneg %p291
        $region78: #{tpu_custom_call.1} parent=59 // pred_check_branch
          %707 = sbr.rel (%p705) target = $region80
        $region79: #{tpu_custom_call.1} parent=59 // pred_region
          %s709 = ssub.s32 128, 128
          %710 = vsyncadd %s698, %s709
          %s711 = smul.addr %s32, 128
          %s712 = scalar_lea.hbm %s11, %s711
          %s714 = sshll.u32 %s701, 4
          %s715 = int_to_ptr.vmem [resolvable:$true] %s714
          %717 = dma.vmem_to_hbm [thread:$0]  %s715, 128, %s712, %s698
        $region80: #{tpu_custom_call.1} parent=59 // pred_fallthru
          _
      $region60: #{tpu_custom_call.1} parent=5 // pred_fallthru
        _
      %p718 = scmp.le.s32.totalorder 2, %s27
      // Predicated region
      $region81: #{tpu_custom_call.1} parent=5 // pred_check
        %p719 = pneg %p718
      $region82: #{tpu_custom_call.1} parent=5 // pred_check_branch
        %721 = sbr.rel (%p719) target = $region84
      $region83: #{tpu_custom_call.1} parent=5 // pred_region
        %s722 = ssub.s32 %s27, 2
        // Predicated region
        $region85: #{tpu_custom_call.1} parent=83 // pred_check
          %p723 = pneg %p271
        $region86: #{tpu_custom_call.1} parent=83 // pred_check_branch
          %725 = sbr.rel (%p723) target = $region88
        $region87: #{tpu_custom_call.1} parent=83 // pred_region
          %p726 = scmp.lt.s32.totalorder %s33, 1
          %s727 = scalar_select %p726, %s33, 1
          %s728 = smul.addr %s727, 8
          %s729 = scalar_lea.vmem %s10, %s728
        $region88: #{tpu_custom_call.1} parent=83 // pred_fallthru
          _
        // Predicated region
        $region89: #{tpu_custom_call.1} parent=83 // pred_check
          %p730 = pneg %p297
        $region90: #{tpu_custom_call.1} parent=83 // pred_check_branch
          %732 = sbr.rel (%p730) target = $region92
        $region91: #{tpu_custom_call.1} parent=83 // pred_region
          %s733 = sand.u32 %s282, 1
          %s734 = scalar_lea.sflag [#allocation5], %s733
          %s735 = sand.u32 %s282, 1
          %s736 = smul.addr %s735, 8
          %s737 = scalar_lea.vmem [#allocation9], %s736
          %738 = dma.done %s734, 128
        $region92: #{tpu_custom_call.1} parent=83 // pred_fallthru
          _
      $region84: #{tpu_custom_call.1} parent=5 // pred_fallthru
        _
    $region6: #{tpu_custom_call.1} parent=1 // loop_footer
      %s31 = sadd.s32 1, %s27
    $region7: #{tpu_custom_call.1} parent=1 // loop_footer_branch
      %26 = sbr.rel target = $region3
    $region8: #{tpu_custom_call.1} parent=1 // loop_exit
      _
    %739 = vsyncpa [#allocation4], 1
    %s740 = scalar_lea.sflag [#allocation4], 1
    %741 = vsyncpa %s740, 1
    %742 = vsyncpa [#allocation7], 1
    %743 = vsyncpa [#allocation5], 1
    %s744 = scalar_lea.sflag [#allocation5], 1
    %745 = vsyncpa %s744, 1

// kernel: tpu_custom_call.1
$region0: #{tpu_custom_call.1}
  #allocation0 [shape = 'u32[]', space=smem, size = 0x4, offset = 0x4, fixed_abs, tag = 'smem constant byte address 0x4 - core index']
  #allocation1 [shape = 'u32[144,128]{1,0:T(1,128)}', space=vmem, size = 0x12000, scoped, tag = 'internal scratch']
  #allocation2 [shape = 'f32[1,1]{1,0:T(1,128)S(1)}', space=vmem, size = 0x200, scoped, tag = 'scoped memory for tpu_custom_call.1']
  %s0 = inlined_call_operand.hbm [shape: f32[16,32], index: 0, kind: input, shape index: {}]
  %s1 = inlined_call_operand.hbm [shape: f32[32,32], index: 1, kind: input, shape index: {}]
  %s2 = inlined_call_operand.vmem [shape: f32[1,32], index: 2, kind: input, shape index: {}]
  %s3 = inlined_call_operand.vmem [shape: f32[1,32], index: 3, kind: input, shape index: {}]
  %s4 = inlined_call_operand.hbm [shape: f32[32,32], index: 4, kind: input, shape index: {}]
  %s5 = inlined_call_operand.vmem [shape: f32[1,32], index: 5, kind: input, shape index: {}]
  %s6 = inlined_call_operand.vmem [shape: f32[1,32], index: 6, kind: input, shape index: {}]
  %s7 = inlined_call_operand.vmem [shape: f32[1,32], index: 7, kind: input, shape index: {}]
  %s8 = inlined_call_operand.vmem [shape: f32[1,32], index: 8, kind: input, shape index: {}]
  %s9 = inlined_call_operand.<no memory space> [shape: f32[1,1], index: 9, kind: input, shape index: {}]
  %s10 = inlined_call_operand.vmem [shape: f32[16,1], index: 10, kind: output, shape index: {0}]
  %s11 = inlined_call_operand.hbm [shape: f32[16,32], index: 11, kind: output, shape index: {1}]
  %12 = xla_tuple %s10, %s11
  %s13 = sld [smem:[#allocation0]]
  $region93: #{tpu_custom_call.1} parent=0
    _
  %s15 = ssub.s32 1, %s13
  %s16 = scalar_select 0, %s15, %s13
  %v17 = vstv %s9
  %18 = vst [vmem:[#allocation2] sm:$0x1] %v17
  $region1: #{tpu_custom_call.1} parent=0
    #allocation3 [shape = 'u8[8192]{0}', space=vmem, size = 0x2000, scoped, tag = 'input window, operand 0']
    #allocation4 [shape = 's32[2]{0}', space=sflag, size = 0x8, scoped, tag = 'scoped memory for tpu_custom_call.1']
    #allocation5 [shape = 's32[2]{0}', space=sflag, size = 0x8, scoped, tag = 'scoped memory for tpu_custom_call.1']
    #allocation6 [shape = 'u8[16384]{0}', space=vmem, size = 0x4000, scoped, tag = 'input window, operand 1, single buffered']
    #allocation7 [shape = 's32[1]{0}', space=sflag, size = 0x4, scoped, tag = 'scoped memory for tpu_custom_call.1']
    #allocation8 [shape = 'u8[16384]{0}', space=vmem, size = 0x4000, scoped, tag = 'input window, operand 4, single buffered']
    #allocation9 [shape = 'u8[8192]{0}', space=vmem, size = 0x2000, scoped, tag = 'output window, operand 1']
    %19 = vsyncpa [#allocation4], 0
    %s20 = scalar_lea.sflag [#allocation4], 1
    %21 = vsyncpa %s20, 0
    %22 = vsyncpa [#allocation7], 0
    %23 = vsyncpa [#allocation5], 0
    %s24 = scalar_lea.sflag [#allocation5], 1
    %25 = vsyncpa %s24, 0
    loop: start=0, step=1, limit=4
    $region2: #{tpu_custom_call.1} parent=1 // loop_pre_header
      _
    $region3: #{tpu_custom_call.1} parent=1 // loop_header
      %s27 = sphi 0, %s31
      %p28 = scmp.ge.s32.totalorder %s27, 4
      %s37 = sphi 0, %s39
      %s40 = sphi 0, %s37
      %s41 = sphi 0, %s40
      %s57 = sphi 0, %s41
      %s61 = sphi 0, %s61
      %s63 = sphi 0, %s61
      %s64 = sphi 0, %s63
      %s78 = sphi 0, %s64
      %s82 = sphi 0, %s82
      %s84 = sphi 0, %s82
      %s85 = sphi 0, %s84
      %s99 = sphi 0, %s85
      %s103 = sphi 0, %s103
      %s105 = sphi 0, %s103
      %s106 = sphi 0, %s105
      %s120 = sphi 0, %s106
      %s124 = sphi 0, %s124
      %s126 = sphi 0, %s124
      %s127 = sphi 0, %s126
      %s141 = sphi 0, %s127
      %s145 = sphi 0, %s145
      %s147 = sphi 0, %s145
      %s148 = sphi 0, %s147
      %s162 = sphi 0, %s148
      %s166 = sphi 0, %s166
      %s168 = sphi 0, %s166
      %s169 = sphi 0, %s168
      %s183 = sphi 0, %s169
      %s187 = sphi 0, %s187
      %s189 = sphi 0, %s187
      %s190 = sphi 0, %s189
      %s204 = sphi 0, %s190
      %s208 = sphi 0, %s208
      %s210 = sphi 0, %s208
      %s211 = sphi 0, %s210
      %s225 = sphi 0, %s211
      %s229 = sphi 0, %s229
      %s231 = sphi 0, %s229
      %s232 = sphi 0, %s231
      %s246 = sphi 0, %s232
      %s252 = sphi 0, %s254
      %s255 = sphi 0, %s252
      %s256 = sphi 0, %s255
      %s272 = sphi 0, %s256
      %s278 = sphi 0, %s280
      %s281 = sphi 0, %s278
      %s282 = sphi 0, %s281
      %s298 = sphi 0, %s282
    $region4: #{tpu_custom_call.1} parent=1 // loop_header_branch
      %30 = sbr.rel (%p28) target = $region8
    $region5: #{tpu_custom_call.1} parent=1 // loop_body
      %s32 = ssub.s32 %s27, 1
      %s33 = ssub.s32 %s27, 2
      %s34 = sadd.s32 %s27, 1
      %s35 = ssub.s32 %s27, %s34
      %p36 = scmp.eq.s32.totalorder %s35, 0
      %s38 = sadd.s32 %s37, 1
      %s39 = scalar_select %p36, %s37, %s38
      %p42 = pneg %p36
      %p43 = scmp.eq.s32.totalorder %s27, 1
      %p44 = por %p42, %p43
      %p45 = scmp.ne.s32.totalorder %s37, %s40
      %p46 = scmp.eq.s32.totalorder %s27, 0
      %p47 = por %p45, %p46
      %p48 = scmp.ne.s32.totalorder %s37, %s40
      %p49 = scmp.eq.s32.totalorder %s32, 1
      %p50 = por %p48, %p49
      %p51 = scmp.ne.s32.totalorder %s40, %s41
      %p52 = scmp.eq.s32.totalorder %s32, 0
      %p53 = por %p51, %p52
      %p54 = scmp.ne.s32.totalorder %s40, %s41
      %p55 = scmp.eq.s32.totalorder %s33, 1
      %p56 = por %p54, %p55
      %p58 = scmp.ne.s32.totalorder %s41, %s57
      %p59 = scmp.eq.s32.totalorder %s33, 0
      %p60 = por %p58, %p59
      %s62 = sadd.s32 %s61, 1
      %p65 = scmp.eq.s32.totalorder %s27, 1
      %p66 = scmp.ne.s32.totalorder %s61, %s63
      %p67 = scmp.eq.s32.totalorder %s27, 0
      %p68 = por %p66, %p67
      %p69 = scmp.ne.s32.totalorder %s61, %s63
      %p70 = scmp.eq.s32.totalorder %s32, 1
      %p71 = por %p69, %p70
      %p72 = scmp.ne.s32.totalorder %s63, %s64
      %p73 = scmp.eq.s32.totalorder %s32, 0
      %p74 = por %p72, %p73
      %p75 = scmp.ne.s32.totalorder %s63, %s64
      %p76 = scmp.eq.s32.totalorder %s33, 1
      %p77 = por %p75, %p76
      %p79 = scmp.ne.s32.totalorder %s64, %s78
      %p80 = scmp.eq.s32.totalorder %s33, 0
      %p81 = por %p79, %p80
      %s83 = sadd.s32 %s82, 1
      %p86 = scmp.eq.s32.totalorder %s27, 1
      %p87 = scmp.ne.s32.totalorder %s82, %s84
      %p88 = scmp.eq.s32.totalorder %s27, 0
      %p89 = por %p87, %p88
      %p90 = scmp.ne.s32.totalorder %s82, %s84
      %p91 = scmp.eq.s32.totalorder %s32, 1
      %p92 = por %p90, %p91
      %p93 = scmp.ne.s32.totalorder %s84, %s85
      %p94 = scmp.eq.s32.totalorder %s32, 0
      %p95 = por %p93, %p94
      %p96 = scmp.ne.s32.totalorder %s84, %s85
      %p97 = scmp.eq.s32.totalorder %s33, 1
      %p98 = por %p96, %p97
      %p100 = scmp.ne.s32.totalorder %s85, %s99
      %p101 = scmp.eq.s32.totalorder %s33, 0
      %p102 = por %p100, %p101
      %s104 = sadd.s32 %s103, 1
      %p107 = scmp.eq.s32.totalorder %s27, 1
      %p108 = scmp.ne.s32.totalorder %s103, %s105
      %p109 = scmp.eq.s32.totalorder %s27, 0
      %p110 = por %p108, %p109
      %p111 = scmp.ne.s32.totalorder %s103, %s105
      %p112 = scmp.eq.s32.totalorder %s32, 1
      %p113 = por %p111, %p112
      %p114 = scmp.ne.s32.totalorder %s105, %s106
      %p115 = scmp.eq.s32.totalorder %s32, 0
      %p116 = por %p114, %p115
      %p117 = scmp.ne.s32.totalorder %s105, %s106
      %p118 = scmp.eq.s32.totalorder %s33, 1
      %p119 = por %p117, %p118
      %p121 = scmp.ne.s32.totalorder %s106, %s120
      %p122 = scmp.eq.s32.totalorder %s33, 0
      %p123 = por %p121, %p122
      %s125 = sadd.s32 %s124, 1
      %p128 = scmp.eq.s32.totalorder %s27, 1
      %p129 = scmp.ne.s32.totalorder %s124, %s126
      %p130 = scmp.eq.s32.totalorder %s27, 0
      %p131 = por %p129, %p130
      %p132 = scmp.ne.s32.totalorder %s124, %s126
      %p133 = scmp.eq.s32.totalorder %s32, 1
      %p134 = por %p132, %p133
      %p135 = scmp.ne.s32.totalorder %s126, %s127
      %p136 = scmp.eq.s32.totalorder %s32, 0
      %p137 = por %p135, %p136
      %p138 = scmp.ne.s32.totalorder %s126, %s127
      %p139 = scmp.eq.s32.totalorder %s33, 1
      %p140 = por %p138, %p139
      %p142 = scmp.ne.s32.totalorder %s127, %s141
      %p143 = scmp.eq.s32.totalorder %s33, 0
      %p144 = por %p142, %p143
      %s146 = sadd.s32 %s145, 1
      %p149 = scmp.eq.s32.totalorder %s27, 1
      %p150 = scmp.ne.s32.totalorder %s145, %s147
      %p151 = scmp.eq.s32.totalorder %s27, 0
      %p152 = por %p150, %p151
      %p153 = scmp.ne.s32.totalorder %s145, %s147
      %p154 = scmp.eq.s32.totalorder %s32, 1
      %p155 = por %p153, %p154
      %p156 = scmp.ne.s32.totalorder %s147, %s148
      %p157 = scmp.eq.s32.totalorder %s32, 0
      %p158 = por %p156, %p157
      %p159 = scmp.ne.s32.totalorder %s147, %s148
      %p160 = scmp.eq.s32.totalorder %s33, 1
      %p161 = por %p159, %p160
      %p163 = scmp.ne.s32.totalorder %s148, %s162
      %p164 = scmp.eq.s32.totalorder %s33, 0
      %p165 = por %p163, %p164
      %s167 = sadd.s32 %s166, 1
      %p170 = scmp.eq.s32.totalorder %s27, 1
      %p171 = scmp.ne.s32.totalorder %s166, %s168
      %p172 = scmp.eq.s32.totalorder %s27, 0
      %p173 = por %p171, %p172
      %p174 = scmp.ne.s32.totalorder %s166, %s168
      %p175 = scmp.eq.s32.totalorder %s32, 1
      %p176 = por %p174, %p175
      %p177 = scmp.ne.s32.totalorder %s168, %s169
      %p178 = scmp.eq.s32.totalorder %s32, 0
      %p179 = por %p177, %p178
      %p180 = scmp.ne.s32.totalorder %s168, %s169
      %p181 = scmp.eq.s32.totalorder %s33, 1
      %p182 = por %p180, %p181
      %p184 = scmp.ne.s32.totalorder %s169, %s183
      %p185 = scmp.eq.s32.totalorder %s33, 0
      %p186 = por %p184, %p185
      %s188 = sadd.s32 %s187, 1
      %p191 = scmp.eq.s32.totalorder %s27, 1
      %p192 = scmp.ne.s32.totalorder %s187, %s189
      %p193 = scmp.eq.s32.totalorder %s27, 0
      %p194 = por %p192, %p193
      %p195 = scmp.ne.s32.totalorder %s187, %s189
      %p196 = scmp.eq.s32.totalorder %s32, 1
      %p197 = por %p195, %p196
      %p198 = scmp.ne.s32.totalorder %s189, %s190
      %p199 = scmp.eq.s32.totalorder %s32, 0
      %p200 = por %p198, %p199
      %p201 = scmp.ne.s32.totalorder %s189, %s190
      %p202 = scmp.eq.s32.totalorder %s33, 1
      %p203 = por %p201, %p202
      %p205 = scmp.ne.s32.totalorder %s190, %s204
      %p206 = scmp.eq.s32.totalorder %s33, 0
      %p207 = por %p205, %p206
      %s209 = sadd.s32 %s208, 1
      %p212 = scmp.eq.s32.totalorder %s27, 1
      %p213 = scmp.ne.s32.totalorder %s208, %s210
      %p214 = scmp.eq.s32.totalorder %s27, 0
      %p215 = por %p213, %p214
      %p216 = scmp.ne.s32.totalorder %s208, %s210
      %p217 = scmp.eq.s32.totalorder %s32, 1
      %p218 = por %p216, %p217
      %p219 = scmp.ne.s32.totalorder %s210, %s211
      %p220 = scmp.eq.s32.totalorder %s32, 0
      %p221 = por %p219, %p220
      %p222 = scmp.ne.s32.totalorder %s210, %s211
      %p223 = scmp.eq.s32.totalorder %s33, 1
      %p224 = por %p222, %p223
      %p226 = scmp.ne.s32.totalorder %s211, %s225
      %p227 = scmp.eq.s32.totalorder %s33, 0
      %p228 = por %p226, %p227
      %s230 = sadd.s32 %s229, 1
      %p233 = scmp.eq.s32.totalorder %s27, 1
      %p234 = scmp.ne.s32.totalorder %s229, %s231
      %p235 = scmp.eq.s32.totalorder %s27, 0
      %p236 = por %p234, %p235
      %p237 = scmp.ne.s32.totalorder %s229, %s231
      %p238 = scmp.eq.s32.totalorder %s32, 1
      %p239 = por %p237, %p238
      %p240 = scmp.ne.s32.totalorder %s231, %s232
      %p241 = scmp.eq.s32.totalorder %s32, 0
      %p242 = por %p240, %p241
      %p243 = scmp.ne.s32.totalorder %s231, %s232
      %p244 = scmp.eq.s32.totalorder %s33, 1
      %p245 = por %p243, %p244
      %p247 = scmp.ne.s32.totalorder %s232, %s246
      %p248 = scmp.eq.s32.totalorder %s33, 0
      %p249 = por %p247, %p248
      %s250 = ssub.s32 %s27, %s34
      %p251 = scmp.eq.s32.totalorder %s250, 0
      %s253 = sadd.s32 %s252, 1
      %s254 = scalar_select %p251, %s252, %s253
      %p257 = pneg %p251
      %p258 = scmp.eq.s32.totalorder %s27, 1
      %p259 = por %p257, %p258
      %p260 = scmp.ne.s32.totalorder %s252, %s255
      %p261 = scmp.eq.s32.totalorder %s27, 0
      %p262 = por %p260, %p261
      %p263 = scmp.ne.s32.totalorder %s252, %s255
      %p264 = scmp.eq.s32.totalorder %s32, 1
      %p265 = por %p263, %p264
      %p266 = scmp.ne.s32.totalorder %s255, %s256
      %p267 = scmp.eq.s32.totalorder %s32, 0
      %p268 = por %p266, %p267
      %p269 = scmp.ne.s32.totalorder %s255, %s256
      %p270 = scmp.eq.s32.totalorder %s33, 1
      %p271 = por %p269, %p270
      %p273 = scmp.ne.s32.totalorder %s256, %s272
      %p274 = scmp.eq.s32.totalorder %s33, 0
      %p275 = por %p273, %p274
      %s276 = ssub.s32 %s27, %s34
      %p277 = scmp.eq.s32.totalorder %s276, 0
      %s279 = sadd.s32 %s278, 1
      %s280 = scalar_select %p277, %s278, %s279
      %p283 = pneg %p277
      %p284 = scmp.eq.s32.totalorder %s27, 1
      %p285 = por %p283, %p284
      %p286 = scmp.ne.s32.totalorder %s278, %s281
      %p287 = scmp.eq.s32.totalorder %s27, 0
      %p288 = por %p286, %p287
      %p289 = scmp.ne.s32.totalorder %s278, %s281
      %p290 = scmp.eq.s32.totalorder %s32, 1
      %p291 = por %p289, %p290
      %p292 = scmp.ne.s32.totalorder %s281, %s282
      %p293 = scmp.eq.s32.totalorder %s32, 0
      %p294 = por %p292, %p293
      %p295 = scmp.ne.s32.totalorder %s281, %s282
      %p296 = scmp.eq.s32.totalorder %s33, 1
      %p297 = por %p295, %p296
      %p299 = scmp.ne.s32.totalorder %s282, %s298
      %p300 = scmp.eq.s32.totalorder %s33, 0
      %p301 = por %p299, %p300
      %p302 = scmp.le.s32.totalorder 1, %s27
      %p303 = scmp.lt.s32.totalorder %s27, 3
      %p304 = pnand %p302, %p303
      %p305 = pneg %p304
      // Predicated region
      $region9: #{tpu_custom_call.1} parent=5 // pred_check
        _
      $region10: #{tpu_custom_call.1} parent=5 // pred_check_branch
        %307 = sbr.rel (%p304) target = $region12
      $region11: #{tpu_custom_call.1} parent=5 // pred_region
        %s308 = ssub.s32 %s27, 1
        // Predicated region
        $region13: #{tpu_custom_call.1} parent=11 // pred_check
          %p309 = pneg %p74
        $region14: #{tpu_custom_call.1} parent=11 // pred_check_branch
          %311 = sbr.rel (%p309) target = $region16
        $region15: #{tpu_custom_call.1} parent=11 // pred_region
          %s313 = ssub.s32 512, 512
          %314 = vsyncadd [#allocation7], %s313
          %s315 = sshll.u32 [#allocation6], 4
          %s316 = int_to_ptr.vmem [resolvable:$true] %s315
          %321 = dma.hbm_to_vmem [thread:$0]  %s1, 512, %s316, [#allocation7], 128, 128, 8
        $region16: #{tpu_custom_call.1} parent=11 // pred_fallthru
          _
        // Predicated region
        $region17: #{tpu_custom_call.1} parent=11 // pred_check
          %p322 = pneg %p95
        $region18: #{tpu_custom_call.1} parent=11 // pred_check_branch
          %324 = sbr.rel (%p322) target = $region20
        $region19: #{tpu_custom_call.1} parent=11 // pred_region
          _
        $region20: #{tpu_custom_call.1} parent=11 // pred_fallthru
          _
        // Predicated region
        $region21: #{tpu_custom_call.1} parent=11 // pred_check
          %p325 = pneg %p116
        $region22: #{tpu_custom_call.1} parent=11 // pred_check_branch
          %327 = sbr.rel (%p325) target = $region24
        $region23: #{tpu_custom_call.1} parent=11 // pred_region
          _
        $region24: #{tpu_custom_call.1} parent=11 // pred_fallthru
          _
        // Predicated region
        $region25: #{tpu_custom_call.1} parent=11 // pred_check
          %p328 = pneg %p137
        $region26: #{tpu_custom_call.1} parent=11 // pred_check_branch
          %330 = sbr.rel (%p328) target = $region28
        $region27: #{tpu_custom_call.1} parent=11 // pred_region
          %s332 = ssub.s32 512, 512
          %333 = vsyncadd [#allocation7], %s332
          %s334 = sshll.u32 [#allocation8], 4
          %s335 = int_to_ptr.vmem [resolvable:$true] %s334
          %340 = dma.hbm_to_vmem [thread:$0]  %s4, 512, %s335, [#allocation7], 128, 128, 8
        $region28: #{tpu_custom_call.1} parent=11 // pred_fallthru
          _
        // Predicated region
        $region29: #{tpu_custom_call.1} parent=11 // pred_check
          %p341 = pneg %p158
        $region30: #{tpu_custom_call.1} parent=11 // pred_check_branch
          %343 = sbr.rel (%p341) target = $region32
        $region31: #{tpu_custom_call.1} parent=11 // pred_region
          _
        $region32: #{tpu_custom_call.1} parent=11 // pred_fallthru
          _
        // Predicated region
        $region33: #{tpu_custom_call.1} parent=11 // pred_check
          %p344 = pneg %p179
        $region34: #{tpu_custom_call.1} parent=11 // pred_check_branch
          %346 = sbr.rel (%p344) target = $region36
        $region35: #{tpu_custom_call.1} parent=11 // pred_region
          _
        $region36: #{tpu_custom_call.1} parent=11 // pred_fallthru
          _
        // Predicated region
        $region37: #{tpu_custom_call.1} parent=11 // pred_check
          %p347 = pneg %p200
        $region38: #{tpu_custom_call.1} parent=11 // pred_check_branch
          %349 = sbr.rel (%p347) target = $region40
        $region39: #{tpu_custom_call.1} parent=11 // pred_region
          _
        $region40: #{tpu_custom_call.1} parent=11 // pred_fallthru
          _
        // Predicated region
        $region41: #{tpu_custom_call.1} parent=11 // pred_check
          %p350 = pneg %p221
        $region42: #{tpu_custom_call.1} parent=11 // pred_check_branch
          %352 = sbr.rel (%p350) target = $region44
        $region43: #{tpu_custom_call.1} parent=11 // pred_region
          _
        $region44: #{tpu_custom_call.1} parent=11 // pred_fallthru
          _
        // Predicated region
        $region45: #{tpu_custom_call.1} parent=11 // pred_check
          %p353 = pneg %p242
        $region46: #{tpu_custom_call.1} parent=11 // pred_check_branch
          %355 = sbr.rel (%p353) target = $region48
        $region47: #{tpu_custom_call.1} parent=11 // pred_region
          _
        $region48: #{tpu_custom_call.1} parent=11 // pred_fallthru
          _
      $region12: #{tpu_custom_call.1} parent=5 // pred_fallthru
        _
      %p356 = scmp.lt.s32.totalorder %s27, 2
      // Predicated region
      $region49: #{tpu_custom_call.1} parent=5 // pred_check
        %p357 = pneg %p356
      $region50: #{tpu_custom_call.1} parent=5 // pred_check_branch
        %359 = sbr.rel (%p357) target = $region52
      $region51: #{tpu_custom_call.1} parent=5 // pred_region
        // Predicated region
        $region53: #{tpu_custom_call.1} parent=51 // pred_check
          %p360 = pneg %p47
        $region54: #{tpu_custom_call.1} parent=51 // pred_check_branch
          %362 = sbr.rel (%p360) target = $region56
        $region55: #{tpu_custom_call.1} parent=51 // pred_region
          %s363 = sand.u32 %s37, 1
          %s364 = scalar_lea.sflag [#allocation4], %s363
          %s365 = sand.u32 %s37, 1
          %s366 = smul.addr %s365, 8
          %s367 = scalar_lea.vmem [#allocation3], %s366
          %s369 = ssub.s32 128, 128
          %370 = vsyncadd %s364, %s369
          %s371 = smul.addr %s27, 128
          %s372 = scalar_lea.hbm %s0, %s371
          %s374 = sshll.u32 %s367, 4
          %s375 = int_to_ptr.vmem [resolvable:$true] %s374
          %377 = dma.hbm_to_vmem [thread:$0]  %s372, 128, %s375, %s364
        $region56: #{tpu_custom_call.1} parent=51 // pred_fallthru
          _
      $region52: #{tpu_custom_call.1} parent=5 // pred_fallthru
        _
      %p378 = scmp.le.s32.totalorder 1, %s27
      %p379 = scmp.lt.s32.totalorder %s27, 3
      %p380 = pnand %p378, %p379
      %p381 = pneg %p380
      // Predicated region
      $region57: #{tpu_custom_call.1} parent=5 // pred_check
        _
      $region58: #{tpu_custom_call.1} parent=5 // pred_check_branch
        %383 = sbr.rel (%p380) target = $region60
      $region59: #{tpu_custom_call.1} parent=5 // pred_region
        %s384 = ssub.s32 %s27, 1
        %s385 = sand.u32 %s40, 1
        %s386 = scalar_lea.sflag [#allocation4], %s385
        %s387 = sand.u32 %s40, 1
        %s388 = smul.addr %s387, 8
        %s389 = scalar_lea.vmem [#allocation3], %s388
        // Predicated region
        $region61: #{tpu_custom_call.1} parent=59 // pred_check
          %p390 = pneg %p53
        $region62: #{tpu_custom_call.1} parent=59 // pred_check_branch
          %392 = sbr.rel (%p390) target = $region64
        $region63: #{tpu_custom_call.1} parent=59 // pred_region
          %393 = dma.done %s386, 128
        $region64: #{tpu_custom_call.1} parent=59 // pred_fallthru
          _
        // Predicated region
        $region65: #{tpu_custom_call.1} parent=59 // pred_check
          %p394 = pneg %p74
        $region66: #{tpu_custom_call.1} parent=59 // pred_check_branch
          %396 = sbr.rel (%p394) target = $region68
        $region67: #{tpu_custom_call.1} parent=59 // pred_region
          %397 = dma.done [#allocation7], 512
        $region68: #{tpu_custom_call.1} parent=59 // pred_fallthru
          _
        // Predicated region
        $region69: #{tpu_custom_call.1} parent=59 // pred_check
          %p398 = pneg %p137
        $region70: #{tpu_custom_call.1} parent=59 // pred_check_branch
          %400 = sbr.rel (%p398) target = $region72
        $region71: #{tpu_custom_call.1} parent=59 // pred_region
          %401 = dma.done [#allocation7], 512
        $region72: #{tpu_custom_call.1} parent=59 // pred_fallthru
          _
        %s402 = sand.u32 %s40, 1
        %s403 = scalar_lea.sflag [#allocation4], %s402
        %s404 = sand.u32 %s40, 1
        %s405 = smul.addr %s404, 8
        %s406 = scalar_lea.vmem [#allocation3], %s405
        %p407 = pneg %p53
        %p408 = pneg %p50
        %p409 = pneg %p74
        %p410 = pneg %p71
        %p411 = pneg %p95
        %p412 = pneg %p92
        %p413 = pneg %p116
        %p414 = pneg %p113
        %p415 = pneg %p137
        %p416 = pneg %p134
        %p417 = pneg %p158
        %p418 = pneg %p155
        %p419 = pneg %p179
        %p420 = pneg %p176
        %p421 = pneg %p200
        %p422 = pneg %p197
        %p423 = pneg %p221
        %p424 = pneg %p218
        %p425 = pneg %p242
        %p426 = pneg %p239
        %p427 = pneg %p268
        %p428 = pneg %p265
        %p429 = scmp.lt.s32.totalorder %s32, 1
        %s430 = scalar_select %p429, %s32, 1
        %s431 = smul.addr %s430, 8
        %s432 = scalar_lea.vmem %s10, %s431
        %p433 = pneg %p294
        %p434 = pneg %p291
        %s435 = sand.u32 %s281, 1
        %s436 = scalar_lea.sflag [#allocation5], %s435
        %s437 = sand.u32 %s281, 1
        %s438 = smul.addr %s437, 8
        %s439 = scalar_lea.vmem [#allocation9], %s438
        %p440 = scmp.lt.s32.totalorder %s32, 1
        %s441 = scalar_select %p440, %s32, 1
        %s442 = smul.addr %s441, 8
        %s443 = scalar_lea.vmem %s10, %s442
        %v444 = vld [vmem:[%s389] sm:$0xff]
        %v445 = vld [vmem:[#allocation6] sm:$0xff]
        %v446 = vld [vmem:[#allocation6 + $0x8] sm:$0xff]
        %v447 = vld [vmem:[#allocation6 + $0x10] sm:$0xff]
        %v448 = vld [vmem:[#allocation6 + $0x18] sm:$0xff]
        %v449 = vld [vmem:[%s2] sm:$0x1]
        %v451 = vlaneseq
        %v452 = vshrl.u32 %v451, 7
        %v453 = vsub.s32 0, %v452
        %v454 = vrot.slane %v449, %v453
        %vm456 = vcmask 261120
        %v458 = vsel %vm456, %v444, 0
        %460 = vmatprep.subr.mxu0 0.0
        %461 = vmatpush1.msra.mxu0 0.0
        %462 = vmatprep.subr.mxu0 0.0
        %463 = vmatpush1.msra.mxu0 0.0
        %464 = vmatprep.subr.mxu0 0.0
        %465 = vmatpush1.msra.mxu0 0.0
        %466 = vmatprep.subr.mxu0 0.0
        %467 = vmatpush1.msra.mxu0 0.0
        %468 = vmatprep.subr.mxu0 0.0
        %469 = vmatpush1.msra.mxu0 0.0
        %470 = vmatprep.subr.mxu0 0.0
        %471 = vmatpush1.msra.mxu0 0.0
        %472 = vmatprep.subr.mxu0 0.0
        %473 = vmatpush1.msra.mxu0 0.0
        %474 = vmatprep.subr.mxu0 0.0
        %475 = vmatpush1.msra.mxu0 0.0
        %476 = vmatprep.subr.mxu0 0.0
        %477 = vmatpush1.msra.mxu0 0.0
        %478 = vmatprep.subr.mxu0 0.0
        %479 = vmatpush1.msra.mxu0 0.0
        %480 = vmatprep.subr.mxu0 0.0
        %481 = vmatpush1.msra.mxu0 0.0
        %482 = vmatprep.subr.mxu0 0.0
        %483 = vmatpush1.msra.mxu0 0.0
        %484 = vmatprep.subr.mxu0 0.0
        %485 = vmatpush1.msra.mxu0 %v448
        %486 = vmatprep.subr.mxu0 0.0
        %487 = vmatpush1.msra.mxu0 %v447
        %488 = vmatprep.subr.mxu0 0.0
        %489 = vmatpush1.msra.mxu0 %v446
        %490 = vmatprep.subr.mxu0 0.0
        %491 = vmatpush1.msra.mxu0 %v445
        %492 = vmatprep.subr.mxu0 0.0
        %493 = vmatpush2.msra.mxu0 0.0
        %494 = vmatprep.subr.mxu0 0.0
        %495 = vmatpush2.msra.mxu0 0.0
        %496 = vmatprep.subr.mxu0 0.0
        %497 = vmatpush2.msra.mxu0 0.0
        %498 = vmatprep.subr.mxu0 0.0
        %499 = vmatpush2.msra.mxu0 0.0
        %500 = vmatprep.subr.mxu0 0.0
        %501 = vmatpush2.msra.mxu0 0.0
        %502 = vmatprep.subr.mxu0 0.0
        %503 = vmatpush2.msra.mxu0 0.0
        %504 = vmatprep.subr.mxu0 0.0
        %505 = vmatpush2.msra.mxu0 0.0
        %506 = vmatprep.subr.mxu0 0.0
        %507 = vmatpush2.msra.mxu0 0.0
        %508 = vmatprep.subr.mxu0 0.0
        %509 = vmatpush2.msra.mxu0 0.0
        %510 = vmatprep.subr.mxu0 0.0
        %511 = vmatpush2.msra.mxu0 0.0
        %512 = vmatprep.subr.mxu0 0.0
        %513 = vmatpush2.msra.mxu0 0.0
        %514 = vmatprep.subr.mxu0 0.0
        %515 = vmatpush2.msra.mxu0 0.0
        %516 = vmatprep.subr.mxu0 0.0
        %517 = vmatpush2.msra.mxu0 0.0
        %518 = vmatprep.subr.mxu0 0.0
        %519 = vmatpush2.msra.mxu0 0.0
        %520 = vmatprep.subr.mxu0 0.0
        %521 = vmatpush2.msra.mxu0 0.0
        %522 = vmatprep.subr.mxu0 0.0
        %523 = vmatpush2.msra.mxu0 0.0
        %524 = vmatprep.mubr.f32.mxu0 0.0
        %525 = vmatmul.mubr.f32.gmra.mxu0 %v458
        %v526 = vpop.f32.mrf.mxu0
        %v527 = vadd.f32 %v454, %v526
        %v528 = vpop.f32.mrf.mxu0
        %529 = vdwg.mxu0
        %v530 = vld [vmem:[%s3] sm:$0x1]
        %vm531 = vcmask 253952
        %v532 = vsel %vm531, %v530, 0.0
        %533 = vadd.xlane.f32.xlu0 %v532
        %v534 = vpop.xlane.xlu0 %533
        %v535 = vrot.slane %v534, 4
        %v536 = vadd.f32 %v534, %v535
        %v537 = vrot.slane %v536, 2
        %v538 = vadd.f32 %v536, %v537
        %v539 = vrot.slane %v538, 1
        %v540 = vadd.f32 %v538, %v539
        %s541 = vtos %v540
        %v542 = vstv %s541
        %v543 = vrcp.pop %v542
        %s544 = vtos %v543
        %s545 = smul.f32 8.0, %s544
        %v546 = vstv %s545
        %v547 = vmul.f32 %v530, %v546
        %v549 = vlaneseq
        %v550 = vshrl.u32 %v549, 7
        %v551 = vsub.s32 0, %v550
        %v552 = vrot.slane %v547, %v551
        %v554 = vmul.f32 %v527, %v552
        %v555 = vld [vmem:[#allocation8] sm:$0xff]
        %v556 = vld [vmem:[#allocation8 + $0x8] sm:$0xff]
        %v557 = vld [vmem:[#allocation8 + $0x10] sm:$0xff]
        %v558 = vld [vmem:[#allocation8 + $0x18] sm:$0xff]
        %v559 = vld [vmem:[%s5] sm:$0x1]
        %v561 = vlaneseq
        %v562 = vshrl.u32 %v561, 7
        %v563 = vsub.s32 0, %v562
        %v564 = vrot.slane %v559, %v563
        %v567 = vsel %vm456, %v554, 0
        %569 = vmatprep.subr.mxu0 0.0
        %570 = vmatpush1.msra.mxu0 0.0
        %571 = vmatprep.subr.mxu0 0.0
        %572 = vmatpush1.msra.mxu0 0.0
        %573 = vmatprep.subr.mxu0 0.0
        %574 = vmatpush1.msra.mxu0 0.0
        %575 = vmatprep.subr.mxu0 0.0
        %576 = vmatpush1.msra.mxu0 0.0
        %577 = vmatprep.subr.mxu0 0.0
        %578 = vmatpush1.msra.mxu0 0.0
        %579 = vmatprep.subr.mxu0 0.0
        %580 = vmatpush1.msra.mxu0 0.0
        %581 = vmatprep.subr.mxu0 0.0
        %582 = vmatpush1.msra.mxu0 0.0
        %583 = vmatprep.subr.mxu0 0.0
        %584 = vmatpush1.msra.mxu0 0.0
        %585 = vmatprep.subr.mxu0 0.0
        %586 = vmatpush1.msra.mxu0 0.0
        %587 = vmatprep.subr.mxu0 0.0
        %588 = vmatpush1.msra.mxu0 0.0
        %589 = vmatprep.subr.mxu0 0.0
        %590 = vmatpush1.msra.mxu0 0.0
        %591 = vmatprep.subr.mxu0 0.0
        %592 = vmatpush1.msra.mxu0 0.0
        %593 = vmatprep.subr.mxu0 0.0
        %594 = vmatpush1.msra.mxu0 %v558
        %595 = vmatprep.subr.mxu0 0.0
        %596 = vmatpush1.msra.mxu0 %v557
        %597 = vmatprep.subr.mxu0 0.0
        %598 = vmatpush1.msra.mxu0 %v556
        %599 = vmatprep.subr.mxu0 0.0
        %600 = vmatpush1.msra.mxu0 %v555
        %601 = vmatprep.subr.mxu0 0.0
        %602 = vmatpush2.msra.mxu0 0.0
        %603 = vmatprep.subr.mxu0 0.0
        %604 = vmatpush2.msra.mxu0 0.0
        %605 = vmatprep.subr.mxu0 0.0
        %606 = vmatpush2.msra.mxu0 0.0
        %607 = vmatprep.subr.mxu0 0.0
        %608 = vmatpush2.msra.mxu0 0.0
        %609 = vmatprep.subr.mxu0 0.0
        %610 = vmatpush2.msra.mxu0 0.0
        %611 = vmatprep.subr.mxu0 0.0
        %612 = vmatpush2.msra.mxu0 0.0
        %613 = vmatprep.subr.mxu0 0.0
        %614 = vmatpush2.msra.mxu0 0.0
        %615 = vmatprep.subr.mxu0 0.0
        %616 = vmatpush2.msra.mxu0 0.0
        %617 = vmatprep.subr.mxu0 0.0
        %618 = vmatpush2.msra.mxu0 0.0
        %619 = vmatprep.subr.mxu0 0.0
        %620 = vmatpush2.msra.mxu0 0.0
        %621 = vmatprep.subr.mxu0 0.0
        %622 = vmatpush2.msra.mxu0 0.0
        %623 = vmatprep.subr.mxu0 0.0
        %624 = vmatpush2.msra.mxu0 0.0
        %625 = vmatprep.subr.mxu0 0.0
        %626 = vmatpush2.msra.mxu0 0.0
        %627 = vmatprep.subr.mxu0 0.0
        %628 = vmatpush2.msra.mxu0 0.0
        %629 = vmatprep.subr.mxu0 0.0
        %630 = vmatpush2.msra.mxu0 0.0
        %631 = vmatprep.subr.mxu0 0.0
        %632 = vmatpush2.msra.mxu0 0.0
        %633 = vmatprep.mubr.f32.mxu0 0.0
        %634 = vmatmul.mubr.f32.gmra.mxu0 %v567
        %v635 = vpop.f32.mrf.mxu0
        %v636 = vadd.f32 %v564, %v635
        %v637 = vpop.f32.mrf.mxu0
        %638 = vdwg.mxu0
        %639 = vst.msk [vmem:[%s439] sm:$0xff] %vm456, %v636
        %v640 = vadd.f32 %v636, %v444
        %v641 = vsel %vm456, %v640, 0.0
        %642 = vadd.xlane.f32.xlu0 %v641
        %v643 = vpop.xlane.xlu0 %642
        %v644 = vrcp.pop 32.0
        %v645 = vmul.f32 %v643, %v644
        %v646 = vsub.f32 %v640, %v645
        %v647 = vmul.f32 %v646, %v646
        %v648 = vsel %vm456, %v647, 0.0
        %649 = vadd.xlane.f32.xlu0 %v648
        %v650 = vpop.xlane.xlu0 %649
        %v651 = vmul.f32 %v650, %v644
        %v652 = vadd.f32 %v651, 1e-12
        %v653 = vrsqrt.pop %v652
        %v654 = vmul.f32 %v646, %v653
        %v655 = vld [vmem:[%s6] sm:$0x1]
        %v657 = vlaneseq
        %v658 = vshrl.u32 %v657, 7
        %v659 = vsub.s32 0, %v658
        %v660 = vrot.slane %v655, %v659
        %v662 = vmul.f32 %v660, %v654
        %v663 = vld [vmem:[%s7] sm:$0x1]
        %v665 = vlaneseq
        %v666 = vshrl.u32 %v665, 7
        %v667 = vsub.s32 0, %v666
        %v668 = vrot.slane %v663, %v667
        %v670 = vadd.f32 %v662, %v668
        %v671 = vmax.f32 %v670, 0.0
        %v672 = vld [vmem:[%s8] sm:$0x1]
        %v674 = vlaneseq
        %v675 = vshrl.u32 %v674, 7
        %v676 = vsub.s32 0, %v675
        %v677 = vrot.slane %v672, %v676
        %v679 = vmul.f32 %v671, %v677
        %v680 = vsel %vm456, %v679, 0.0
        %681 = vadd.xlane.f32.xlu0 %v680
        %v682 = vpop.xlane.xlu0 %681
        %v683 = vld [vmem:[#allocation2] sm:$0x1]
        %v685 = vlaneseq
        %v686 = vshrl.u32 %v685, 7
        %v687 = vsub.s32 0, %v686
        %v688 = vrot.slane %v683, %v687
        %v690 = vadd.f32 %v682, %v688
        %vm691 = vcmask 7168
        %692 = vst.msk [vmem:[%s443] sm:$0xff] %vm691, %v690
        %p693 = scmp.lt.s32.totalorder %s32, 1
        %s694 = scalar_select %p693, %s32, 1
        %s695 = smul.addr %s694, 8
        %s696 = scalar_lea.vmem %s10, %s695
        %s697 = sand.u32 %s281, 1
        %s698 = scalar_lea.sflag [#allocation5], %s697
        %s699 = sand.u32 %s281, 1
        %s700 = smul.addr %s699, 8
        %s701 = scalar_lea.vmem [#allocation9], %s700
        // Predicated region
        $region73: #{tpu_custom_call.1} parent=59 // pred_check
          %p702 = pneg %p265
        $region74: #{tpu_custom_call.1} parent=59 // pred_check_branch
          %704 = sbr.rel (%p702) target = $region76
        $region75: #{tpu_custom_call.1} parent=59 // pred_region
          _
        $region76: #{tpu_custom_call.1} parent=59 // pred_fallthru
          _
        // Predicated region
        $region77: #{tpu_custom_call.1} parent=59 // pred_check
          %p705 = pneg %p291
        $region78: #{tpu_custom_call.1} parent=59 // pred_check_branch
          %707 = sbr.rel (%p705) target = $region80
        $region79: #{tpu_custom_call.1} parent=59 // pred_region
          %s709 = ssub.s32 128, 128
          %710 = vsyncadd %s698, %s709
          %s711 = smul.addr %s32, 128
          %s712 = scalar_lea.hbm %s11, %s711
          %s714 = sshll.u32 %s701, 4
          %s715 = int_to_ptr.vmem [resolvable:$true] %s714
          %717 = dma.vmem_to_hbm [thread:$0]  %s715, 128, %s712, %s698
        $region80: #{tpu_custom_call.1} parent=59 // pred_fallthru
          _
      $region60: #{tpu_custom_call.1} parent=5 // pred_fallthru
        _
      %p718 = scmp.le.s32.totalorder 2, %s27
      // Predicated region
      $region81: #{tpu_custom_call.1} parent=5 // pred_check
        %p719 = pneg %p718
      $region82: #{tpu_custom_call.1} parent=5 // pred_check_branch
        %721 = sbr.rel (%p719) target = $region84
      $region83: #{tpu_custom_call.1} parent=5 // pred_region
        %s722 = ssub.s32 %s27, 2
        // Predicated region
        $region85: #{tpu_custom_call.1} parent=83 // pred_check
          %p723 = pneg %p271
        $region86: #{tpu_custom_call.1} parent=83 // pred_check_branch
          %725 = sbr.rel (%p723) target = $region88
        $region87: #{tpu_custom_call.1} parent=83 // pred_region
          %p726 = scmp.lt.s32.totalorder %s33, 1
          %s727 = scalar_select %p726, %s33, 1
          %s728 = smul.addr %s727, 8
          %s729 = scalar_lea.vmem %s10, %s728
        $region88: #{tpu_custom_call.1} parent=83 // pred_fallthru
          _
        // Predicated region
        $region89: #{tpu_custom_call.1} parent=83 // pred_check
          %p730 = pneg %p297
        $region90: #{tpu_custom_call.1} parent=83 // pred_check_branch
          %732 = sbr.rel (%p730) target = $region92
        $region91: #{tpu_custom_call.1} parent=83 // pred_region
          %s733 = sand.u32 %s282, 1
          %s734 = scalar_lea.sflag [#allocation5], %s733
          %s735 = sand.u32 %s282, 1
          %s736 = smul.addr %s735, 8
          %s737 = scalar_lea.vmem [#allocation9], %s736
          %738 = dma.done %s734, 128
        $region92: #{tpu_custom_call.1} parent=83 // pred_fallthru
          _
      $region84: #{tpu_custom_call.1} parent=5 // pred_fallthru
        _
    $region6: #{tpu_custom_call.1} parent=1 // loop_footer
      %s31 = sadd.s32 1, %s27
    $region7: #{tpu_custom_call.1} parent=1 // loop_footer_branch
      %26 = sbr.rel target = $region3
    $region8: #{tpu_custom_call.1} parent=1 // loop_exit
      _
    %739 = vsyncpa [#allocation4], 1
    %s740 = scalar_lea.sflag [#allocation4], 1
    %741 = vsyncpa %s740, 1
    %742 = vsyncpa [#allocation7], 1
    %743 = vsyncpa [#allocation5], 1
    %s744 = scalar_lea.sflag [#allocation5], 1
    %745 = vsyncpa %s744, 1

</llo_original>
